<compile_context>
chip_gen: v6e
topology: v6e:2x2x1
jax: 0.10.0
libtpu: 0.0.40
codegen_flags: <defaults>
</compile_context>

<pallas_src>
import functools
import math

import numpy as np
import jax
import jax.numpy as jnp
from jax import lax
from jax.experimental import pallas as pl
from jax.experimental.pallas import tpu as pltpu

# ---------------- model hyper-parameters (small, deterministic) ----------------
D_MODEL = 32
NHEAD = 4
DIM_FF = 64
L_TGT = 8
L_MEM = 16
BATCH = 2
LN_EPS = 1e-5


# =========================== fused decoder-layer kernel ===========================
def decoder_layer_kernel(tgt_ref, mem_ref, qpos_ref, pos_ref,
                         w_ref, w2_ref, vec_ref,
                         hmask_ref, smask_s_ref, smask_c_ref,
                         out_ref, *, d_model, nhead, dim_ff):
    f32 = jnp.float32
    bf16 = jnp.bfloat16
    d = d_model
    nq = tgt_ref.shape[0]            # L_tgt * N   (flattened query rows, batch-interleaved)
    nk = mem_ref.shape[0]            # L_mem * N   (flattened memory rows)
    rows_q = nhead * nq              # head-stacked query rows

    tgt = tgt_ref[...]               # (nq, d)  f32
    mem = mem_ref[...]               # (nk, d)  f32
    qpos = qpos_ref[...]
    pos = pos_ref[...]
    head_mask = hmask_ref[...]       # (H*nq, d) f32, static 0/1

    def vrow(r, width):              # bias / LN vector: row r of the packed (13, 3d) slab
        return vec_ref[r:r + 1, 0:width]             # (1, width) -> broadcasts over rows

    def matw(c0, width):             # bf16 weight block: static column slice of (d, 8d+ff)
        return w_ref[:, c0:c0 + width]

    def mm(a, b):                    # bf16 MXU matmul, f32 accumulation
        return jnp.dot(a.astype(bf16), b.astype(bf16), preferred_element_type=f32)

    def attention(q, k, v, smask):
        # Heads stacked along rows: row h*nq+i keeps only head h's features of query i
        # (static head_mask), so one wide 2D matmul yields all per-head score blocks.
        # Batch mixing is removed with a pre-baked additive 0/-1e30 mask.
        q_stack = jnp.broadcast_to(q[None, :, :], (nhead, nq, d)).reshape(rows_q, d)
        q_stack = q_stack * head_mask                                    # (H*nq, d)
        s = lax.dot_general(q_stack.astype(bf16), k.astype(bf16),
                            (((1,), (1,)), ((), ())),
                            preferred_element_type=f32)                   # (H*nq, nkeys)
        s = s + smask                                                     # f32 masking
        m = jnp.max(s, axis=-1, keepdims=True)
        p = jnp.exp(s - m)
        p = p * pl.reciprocal(jnp.sum(p, axis=-1, keepdims=True), approx=True)
        o_full = mm(p, v) * head_mask                                     # (H*nq, d)
        o = o_full[0:nq]                  # fold head blocks -> implicit head concat
        for h in range(1, nhead):
            o = o + o_full[h * nq:(h + 1) * nq]
        return o                                                          # (nq, d) f32

    def layer_norm(x, g, b):          # f32 vector math (v5e-friendly)
        mu = jnp.mean(x, axis=-1, keepdims=True)
        xc = x - mu
        var = jnp.mean(xc * xc, axis=-1, keepdims=True)
        return xc * lax.rsqrt(var + LN_EPS) * g + b

    # ------------- self attention: q = k = tgt + query_pos, v = tgt -------------
    # One fused (2*nq, d) x (d, 3d) matmul for Q (pre-scaled), K and V; diagonal block slices.
    s_in = jnp.concatenate([tgt + qpos, tgt], axis=0)                       # (2nq, d)
    r = mm(s_in, matw(0, 3 * d)) + vrow(0, 3 * d)                           # (2nq, 3d)
    q_s = r[0:nq, 0:d]               # (tgt+qpos) @ (Wq/sqrt(hd)) + bq/sqrt(hd)
    k_s = r[0:nq, d:2 * d]
    v_s = r[nq:2 * nq, 2 * d:3 * d]
    att = attention(q_s, k_s, v_s, smask_s_ref[...])
    sa = mm(att, matw(3 * d, d)) + vrow(1, d)
    x = layer_norm(tgt + sa, vrow(7, d), vrow(8, d))          # dropout1 = identity (eval)

    # -------- cross attention: q = x + query_pos, k = memory + pos, v = memory --------
    # K/V fused into one (2*nk, d) x (d, 2d) matmul; Q depends on x so it stays separate.
    c_in = jnp.concatenate([mem + pos, mem], axis=0)                        # (2nk, d)
    r2 = mm(c_in, matw(5 * d, 2 * d)) + vrow(3, 2 * d)                      # (2nk, 2d)
    k_c = r2[0:nk, 0:d]
    v_c = r2[nk:2 * nk, d:2 * d]
    q_c = mm(x + qpos, matw(4 * d, d)) + vrow(2, d)           # Wq_c pre-scaled at pack time
    att2 = attention(q_c, k_c, v_c, smask_c_ref[...])
    ca = mm(att2, matw(7 * d, d)) + vrow(4, d)
    x = layer_norm(x + ca, vrow(9, d), vrow(10, d))           # dropout2 = identity (eval)

    # ---------------- feed forward: linear1 -> relu -> linear2 ----------------
    h1 = jnp.maximum(mm(x, matw(8 * d, dim_ff)) + vrow(5, dim_ff), 0.0)
    ff = mm(h1, w2_ref[...]) + vrow(6, d)
    x = layer_norm(x + ff, vrow(11, d), vrow(12, d))          # dropout3 = identity (eval)

    out_ref[...] = x.astype(out_ref.dtype)


# =========================== parameters & packing ===========================
def make_params(key):
    d, ff = D_MODEL, DIM_FF
    ks = iter(jax.random.split(key, 24))
    s = 0.02

    def mat(shape):
        return jax.random.normal(next(ks), shape, jnp.float32) * s

    return {
        "sa_wq": mat((d, d)), "sa_wk": mat((d, d)), "sa_wv": mat((d, d)), "sa_wo": mat((d, d)),
        "sa_bq": mat((d,)), "sa_bk": mat((d,)), "sa_bv": mat((d,)), "sa_bo": mat((d,)),
        "ca_wq": mat((d, d)), "ca_wk": mat((d, d)), "ca_wv": mat((d, d)), "ca_wo": mat((d, d)),
        "ca_bq": mat((d,)), "ca_bk": mat((d,)), "ca_bv": mat((d,)), "ca_bo": mat((d,)),
        "w1": mat((d, ff)), "b1": mat((ff,)),
        "w2": mat((ff, d)), "b2": mat((d,)),
        "g1": jnp.ones((d,), jnp.float32), "be1": jnp.zeros((d,), jnp.float32),
        "g2": jnp.ones((d,), jnp.float32), "be2": jnp.zeros((d,), jnp.float32),
        "g3": jnp.ones((d,), jnp.float32), "be3": jnp.zeros((d,), jnp.float32),
    }


def pack_params(p):
    """One-time packing into 3 kernel operands (x @ W layout), bf16 MXU weights,
    1/sqrt(head_dim) folded into the query projections/biases."""
    d = D_MODEL
    scale = 1.0 / math.sqrt(d // NHEAD)
    w_slab = jnp.concatenate(
        [p["sa_wq"] * scale, p["sa_wk"], p["sa_wv"], p["sa_wo"],
         p["ca_wq"] * scale, p["ca_wk"], p["ca_wv"], p["ca_wo"],
         p["w1"]], axis=1).astype(jnp.bfloat16)                  # (d, 8d + ff) bf16

    def row(v, width=3 * D_MODEL):
        return jnp.pad(v, (0, width - v.shape[0]))[None, :]

    vec_slab = jnp.concatenate(
        [row(jnp.concatenate([p["sa_bq"] * scale, p["sa_bk"], p["sa_bv"]])),  # 0: fused self qkv
         row(p["sa_bo"]),                                         # 1
         row(p["ca_bq"] * scale),                                 # 2
         row(jnp.concatenate([p["ca_bk"], p["ca_bv"]])),          # 3: fused cross kv
         row(p["ca_bo"]),                                         # 4
         row(p["b1"]), row(p["b2"]),                              # 5, 6
         row(p["g1"]), row(p["be1"]),                             # 7, 8
         row(p["g2"]), row(p["be2"]),                             # 9, 10
         row(p["g3"]), row(p["be3"])], axis=0)                    # 11, 12  -> (13, 3d) f32
    return w_slab, p["w2"].astype(jnp.bfloat16), vec_slab


def _make_masks(nq, nk, n_batch, nhead, d):
    """Static 0/1 head mask and additive 0/-1e30 batch score masks (pre-baked, no kernel iota)."""
    hd = d // nhead
    rows = nhead * nq
    ridx = np.arange(rows)
    head_mask = (ridx[:, None] // nq == np.arange(d)[None, :] // hd).astype(np.float32)
    qb = (ridx % nq) % n_batch
    smask_s = np.where(qb[:, None] == (np.arange(nq) % n_batch)[None, :], 0.0, -1e30)
    smask_c = np.where(qb[:, None] == (np.arange(nk) % n_batch)[None, :], 0.0, -1e30)
    return (jnp.asarray(head_mask),
            jnp.asarray(smask_s, jnp.float32),
            jnp.asarray(smask_c, jnp.float32))


# =========================== wrapper ===========================
@jax.jit
def transformer_decoder_layer(tgt, memory, query_pos, pos, w_slab, w2, vec_slab):
    """tgt/query_pos: (Lt, N, d); memory/pos: (Lm, N, d). Returns (Lt, N, d)."""
    Lt, N, d = tgt.shape
    Lm = memory.shape[0]
    dim_ff = w2.shape[0]
    nq, nk = Lt * N, Lm * N
    rows_q = NHEAD * nq

    # (L, N, d) -> (L*N, d): a row-major collapse (free), NOT a transpose.
    tgt_f = tgt.reshape(nq, d)
    mem_f = memory.reshape(nk, d)
    qpos_f = query_pos.reshape(nq, d)
    pos_f = pos.reshape(nk, d)

    head_mask, smask_s, smask_c = _make_masks(nq, nk, N, NHEAD, d)

    kernel = functools.partial(decoder_layer_kernel, d_model=d, nhead=NHEAD, dim_ff=dim_ff)

    # rough scheduling hint for XLA
    flops = 2 * (2 * nq * d * 3 * d + rows_q * d * nq + rows_q * nq * d + nq * d * d
                 + 2 * nk * d * 2 * d + nq * d * d + rows_q * d * nk + rows_q * nk * d
                 + nq * d * d + nq * d * dim_ff + nq * dim_ff * d)
    bytes_accessed = (4 * (2 * nq * d + 2 * nk * d)                 # f32 activations in
                      + 2 * (d * (8 * d + dim_ff) + dim_ff * d)     # bf16 weights
                      + 4 * (13 * 3 * d + rows_q * d + rows_q * nq + rows_q * nk)  # vecs+masks
                      + 4 * nq * d)                                  # f32 out
    cost = pl.CostEstimate(flops=int(flops),
                           transcendentals=int(rows_q * (nq + nk) + 3 * nq),
                           bytes_accessed=int(bytes_accessed))

    vmem = lambda: pl.BlockSpec(memory_space=pltpu.MemorySpace.VMEM)
    out_f = pl.pallas_call(
        kernel,
        out_shape=jax.ShapeDtypeStruct((nq, d), jnp.float32),
        in_specs=[vmem() for _ in range(10)],
        out_specs=vmem(),
        cost_estimate=cost,
    )(tgt_f, mem_f, qpos_f, pos_f, w_slab, w2, vec_slab, head_mask, smask_s, smask_c)

    return out_f.reshape(Lt, N, d)


# ---------------- pure-JAX f32 reference (for correctness check) ----------------
def _ref_mha(q_in, k_in, v_in, wq, bq, wk, bk, wv, bv, wo, bo, nhead):
    Lq, N, d = q_in.shape
    Lk = k_in.shape[0]
    hd = d // nhead
    q = (q_in @ wq + bq).reshape(Lq, N, nhead, hd) * (hd ** -0.5)
    k = (k_in @ wk + bk).reshape(Lk, N, nhead, hd)
    v = (v_in @ wv + bv).reshape(Lk, N, nhead, hd)
    s = jnp.einsum("qnhd,knhd->nhqk", q, k)
    p = jax.nn.softmax(s, axis=-1)
    o = jnp.einsum("nhqk,knhd->qnhd", p, v).reshape(Lq, N, d)
    return o @ wo + bo


def _ref_ln(x, g, b):
    mu = jnp.mean(x, -1, keepdims=True)
    var = jnp.mean((x - mu) ** 2, -1, keepdims=True)
    return (x - mu) / jnp.sqrt(var + LN_EPS) * g + b


def reference(tgt, memory, query_pos, pos, p):
    qk = tgt + query_pos
    t = tgt + _ref_mha(qk, qk, tgt, p["sa_wq"], p["sa_bq"], p["sa_wk"], p["sa_bk"],
                       p["sa_wv"], p["sa_bv"], p["sa_wo"], p["sa_bo"], NHEAD)
    t = _ref_ln(t, p["g1"], p["be1"])
    t = t + _ref_mha(t + query_pos, memory + pos, memory,
                     p["ca_wq"], p["ca_bq"], p["ca_wk"], p["ca_bk"],
                     p["ca_wv"], p["ca_bv"], p["ca_wo"], p["ca_bo"], NHEAD)
    t = _ref_ln(t, p["g2"], p["be2"])
    h = jnp.maximum(t @ p["w1"] + p["b1"], 0.0)
    t = t + h @ p["w2"] + p["b2"]
    t = _ref_ln(t, p["g3"], p["be3"])
    return t


if __name__ == "__main__":
    key = jax.random.PRNGKey(0)
    k_tgt, k_mem, k_qp, k_pos, k_par = jax.random.split(key, 5)

    tgt = jax.random.normal(k_tgt, (L_TGT, BATCH, D_MODEL), jnp.float32)
    memory = jax.random.normal(k_mem, (L_MEM, BATCH, D_MODEL), jnp.float32)
    query_pos = jax.random.normal(k_qp, (L_TGT, BATCH, D_MODEL), jnp.float32)
    pos = jax.random.normal(k_pos, (L_MEM, BATCH, D_MODEL), jnp.float32)

    params = make_params(k_par)
    w_slab, w2, vec_slab = pack_params(params)        # one-time packing, off the hot path

    out = transformer_decoder_layer(tgt, memory, query_pos, pos, w_slab, w2, vec_slab)
    out = jax.block_until_ready(out)

    ref = reference(tgt, memory, query_pos, pos, params)
    assert out.shape == (L_TGT, BATCH, D_MODEL)
    # tolerance covers bf16 MXU operands (f32 accumulation) + approx EUP reciprocal in softmax
    assert jnp.allclose(out, ref, atol=2e-2, rtol=2e-2), "mismatch vs reference"

    # TODO(synk): dropout layers are identity (eval semantics); attn_mask / key_padding_mask are None.
    print("KERNEL_OK")
</pallas_src>

<mosaic_0001>
module attributes {stable_mosaic.version = 11 : i64} {
  func.func @decoder_layer_kernel(%arg0: memref<16x32xf32, #tpu.memory_space<vmem>>, %arg1: memref<32x32xf32, #tpu.memory_space<vmem>>, %arg2: memref<16x32xf32, #tpu.memory_space<vmem>>, %arg3: memref<32x32xf32, #tpu.memory_space<vmem>>, %arg4: memref<32x320xbf16, #tpu.memory_space<vmem>>, %arg5: memref<64x32xbf16, #tpu.memory_space<vmem>>, %arg6: memref<13x96xf32, #tpu.memory_space<vmem>>, %arg7: memref<64x32xf32, #tpu.memory_space<vmem>>, %arg8: memref<64x16xf32, #tpu.memory_space<vmem>>, %arg9: memref<64x32xf32, #tpu.memory_space<vmem>>, %arg10: memref<16x32xf32, #tpu.memory_space<vmem>>) attributes {dimension_semantics = [], scalar_prefetch = 0 : i64, scratch_operands = 0 : i64, tpu.core_type = #tpu.core_type<tc>} {
    %c0 = arith.constant 0 : index
    %c0_0 = arith.constant 0 : index
    %0 = vector.load %arg0[%c0, %c0_0] : memref<16x32xf32, #tpu.memory_space<vmem>>, vector<16x32xf32>
    %c0_1 = arith.constant 0 : index
    %c0_2 = arith.constant 0 : index
    %1 = vector.load %arg1[%c0_1, %c0_2] : memref<32x32xf32, #tpu.memory_space<vmem>>, vector<32x32xf32>
    %c0_3 = arith.constant 0 : index
    %c0_4 = arith.constant 0 : index
    %2 = vector.load %arg2[%c0_3, %c0_4] : memref<16x32xf32, #tpu.memory_space<vmem>>, vector<16x32xf32>
    %c0_5 = arith.constant 0 : index
    %c0_6 = arith.constant 0 : index
    %3 = vector.load %arg3[%c0_5, %c0_6] : memref<32x32xf32, #tpu.memory_space<vmem>>, vector<32x32xf32>
    %c0_7 = arith.constant 0 : index
    %c0_8 = arith.constant 0 : index
    %4 = vector.load %arg7[%c0_7, %c0_8] : memref<64x32xf32, #tpu.memory_space<vmem>>, vector<64x32xf32>
    %5 = arith.addf %0, %2 : vector<16x32xf32>
    %6 = tpu.concatenate %5, %0 in 0 : vector<16x32xf32>, vector<16x32xf32> -> vector<32x32xf32>
    %c0_9 = arith.constant 0 : index
    %c0_10 = arith.constant 0 : index
    %7 = vector.load %arg4[%c0_9, %c0_10] : memref<32x320xbf16, #tpu.memory_space<vmem>>, vector<32x96xbf16>
    %8 = arith.truncf %6 : vector<32x32xf32> to vector<32x32xbf16>
    %cst = arith.constant dense<0.000000e+00> : vector<32x96xf32>
    %9 = tpu.matmul %8, %7, %cst {dimension_numbers = #tpu.dot_dimension_numbers<[1], [0], [0], [1], [0, 0, 1, 1], [], []>} : vector<32x32xbf16>, vector<32x96xbf16>, vector<32x96xf32> -> vector<32x96xf32>
    %c0_11 = arith.constant 0 : index
    %c0_12 = arith.constant 0 : index
    %10 = vector.load %arg6[%c0_11, %c0_12] : memref<13x96xf32, #tpu.memory_space<vmem>>, vector<1x96xf32>
    %11 = vector.broadcast %10 : vector<1x96xf32> to vector<32x96xf32>
    %12 = arith.addf %9, %11 : vector<32x96xf32>
    %13 = vector.extract_strided_slice %12 {offsets = [0, 0], sizes = [16, 32], strides = [1, 1]} : vector<32x96xf32> to vector<16x32xf32>
    %14 = vector.extract_strided_slice %12 {offsets = [0, 32], sizes = [16, 32], strides = [1, 1]} : vector<32x96xf32> to vector<16x32xf32>
    %15 = vector.extract_strided_slice %12 {offsets = [16, 64], sizes = [16, 32], strides = [1, 1]} : vector<32x96xf32> to vector<16x32xf32>
    %c0_13 = arith.constant 0 : index
    %c0_14 = arith.constant 0 : index
    %16 = vector.load %arg8[%c0_13, %c0_14] : memref<64x16xf32, #tpu.memory_space<vmem>>, vector<64x16xf32>
    %17 = vector.shape_cast %13 : vector<16x32xf32> to vector<1x16x32xf32>
    %18 = vector.shape_cast %17 : vector<1x16x32xf32> to vector<1x16x32xf32>
    %19 = vector.broadcast %18 : vector<1x16x32xf32> to vector<4x16x32xf32>
    %20 = vector.shape_cast %19 : vector<4x16x32xf32> to vector<64x32xf32>
    %21 = arith.mulf %20, %4 : vector<64x32xf32>
    %22 = arith.truncf %21 : vector<64x32xf32> to vector<64x32xbf16>
    %23 = arith.truncf %14 : vector<16x32xf32> to vector<16x32xbf16>
    %cst_15 = arith.constant dense<0.000000e+00> : vector<64x16xf32>
    %24 = tpu.matmul %22, %23, %cst_15 {dimension_numbers = #tpu.dot_dimension_numbers<[1], [1], [0], [0], [0, 0, 1, 0], [], []>} : vector<64x32xbf16>, vector<16x32xbf16>, vector<64x16xf32> -> vector<64x16xf32>
    %25 = arith.addf %24, %16 : vector<64x16xf32>
    %cst_16 = arith.constant dense<0xFF800000> : vector<64xf32>
    %26 = vector.multi_reduction <maximumf>, %25, %cst_16 [1] : vector<64x16xf32> to vector<64xf32>
    %27 = vector.shape_cast %26 : vector<64xf32> to vector<64x1xf32>
    %28 = vector.broadcast %27 : vector<64x1xf32> to vector<64x16xf32>
    %29 = arith.subf %25, %28 : vector<64x16xf32>
    %30 = math.exp %29 : vector<64x16xf32>
    %cst_17 = arith.constant dense<0.000000e+00> : vector<64xf32>
    %31 = vector.multi_reduction <add>, %30, %cst_17 [1] : vector<64x16xf32> to vector<64xf32>
    %32 = vector.shape_cast %31 : vector<64xf32> to vector<64x1xf32>
    %33 = tpu.reciprocal %32 {approx = true} : vector<64x1xf32> -> vector<64x1xf32>
    %34 = vector.broadcast %33 : vector<64x1xf32> to vector<64x16xf32>
    %35 = arith.mulf %30, %34 : vector<64x16xf32>
    %36 = arith.truncf %35 : vector<64x16xf32> to vector<64x16xbf16>
    %37 = arith.truncf %15 : vector<16x32xf32> to vector<16x32xbf16>
    %cst_18 = arith.constant dense<0.000000e+00> : vector<64x32xf32>
    %38 = tpu.matmul %36, %37, %cst_18 {dimension_numbers = #tpu.dot_dimension_numbers<[1], [0], [0], [1], [0, 0, 1, 1], [], []>} : vector<64x16xbf16>, vector<16x32xbf16>, vector<64x32xf32> -> vector<64x32xf32>
    %39 = arith.mulf %38, %4 : vector<64x32xf32>
    %40 = vector.extract_strided_slice %39 {offsets = [0, 0], sizes = [16, 32], strides = [1, 1]} : vector<64x32xf32> to vector<16x32xf32>
    %41 = vector.extract_strided_slice %39 {offsets = [16, 0], sizes = [16, 32], strides = [1, 1]} : vector<64x32xf32> to vector<16x32xf32>
    %42 = arith.addf %40, %41 : vector<16x32xf32>
    %43 = vector.extract_strided_slice %39 {offsets = [32, 0], sizes = [16, 32], strides = [1, 1]} : vector<64x32xf32> to vector<16x32xf32>
    %44 = arith.addf %42, %43 : vector<16x32xf32>
    %45 = vector.extract_strided_slice %39 {offsets = [48, 0], sizes = [16, 32], strides = [1, 1]} : vector<64x32xf32> to vector<16x32xf32>
    %46 = arith.addf %44, %45 : vector<16x32xf32>
    %c0_19 = arith.constant 0 : index
    %c96 = arith.constant 96 : index
    %47 = vector.load %arg4[%c0_19, %c96] : memref<32x320xbf16, #tpu.memory_space<vmem>>, vector<32x32xbf16>
    %48 = arith.truncf %46 : vector<16x32xf32> to vector<16x32xbf16>
    %cst_20 = arith.constant dense<0.000000e+00> : vector<16x32xf32>
    %49 = tpu.matmul %48, %47, %cst_20 {dimension_numbers = #tpu.dot_dimension_numbers<[1], [0], [0], [1], [0, 0, 1, 1], [], []>} : vector<16x32xbf16>, vector<32x32xbf16>, vector<16x32xf32> -> vector<16x32xf32>
    %c1 = arith.constant 1 : index
    %c0_21 = arith.constant 0 : index
    %50 = vector.load %arg6[%c1, %c0_21] : memref<13x96xf32, #tpu.memory_space<vmem>>, vector<1x32xf32>
    %51 = vector.broadcast %50 : vector<1x32xf32> to vector<16x32xf32>
    %52 = arith.addf %49, %51 : vector<16x32xf32>
    %53 = arith.addf %0, %52 : vector<16x32xf32>
    %c7 = arith.constant 7 : index
    %c0_22 = arith.constant 0 : index
    %54 = vector.load %arg6[%c7, %c0_22] : memref<13x96xf32, #tpu.memory_space<vmem>>, vector<1x32xf32>
    %c8 = arith.constant 8 : index
    %c0_23 = arith.constant 0 : index
    %55 = vector.load %arg6[%c8, %c0_23] : memref<13x96xf32, #tpu.memory_space<vmem>>, vector<1x32xf32>
    %cst_24 = arith.constant dense<0.000000e+00> : vector<16xf32>
    %56 = vector.multi_reduction <add>, %53, %cst_24 [1] : vector<16x32xf32> to vector<16xf32>
    %57 = vector.shape_cast %56 : vector<16xf32> to vector<16x1xf32>
    %cst_25 = arith.constant 3.200000e+01 : f32
    %58 = vector.broadcast %cst_25 : f32 to vector<16x1xf32>
    %59 = arith.divf %57, %58 : vector<16x1xf32>
    %60 = vector.broadcast %59 : vector<16x1xf32> to vector<16x32xf32>
    %61 = arith.subf %53, %60 : vector<16x32xf32>
    %62 = arith.mulf %61, %61 : vector<16x32xf32>
    %cst_26 = arith.constant dense<0.000000e+00> : vector<16xf32>
    %63 = vector.multi_reduction <add>, %62, %cst_26 [1] : vector<16x32xf32> to vector<16xf32>
    %64 = vector.shape_cast %63 : vector<16xf32> to vector<16x1xf32>
    %cst_27 = arith.constant 3.200000e+01 : f32
    %65 = vector.broadcast %cst_27 : f32 to vector<16x1xf32>
    %66 = arith.divf %64, %65 : vector<16x1xf32>
    %cst_28 = arith.constant 9.99999974E-6 : f32
    %67 = vector.broadcast %cst_28 : f32 to vector<16x1xf32>
    %68 = arith.addf %66, %67 : vector<16x1xf32>
    %69 = math.rsqrt %68 : vector<16x1xf32>
    %70 = vector.broadcast %69 : vector<16x1xf32> to vector<16x32xf32>
    %71 = arith.mulf %61, %70 : vector<16x32xf32>
    %72 = vector.broadcast %54 : vector<1x32xf32> to vector<16x32xf32>
    %73 = arith.mulf %71, %72 : vector<16x32xf32>
    %74 = vector.broadcast %55 : vector<1x32xf32> to vector<16x32xf32>
    %75 = arith.addf %73, %74 : vector<16x32xf32>
    %76 = arith.addf %1, %3 : vector<32x32xf32>
    %77 = tpu.concatenate %76, %1 in 0 : vector<32x32xf32>, vector<32x32xf32> -> vector<64x32xf32>
    %c0_29 = arith.constant 0 : index
    %c160 = arith.constant 160 : index
    %78 = vector.load %arg4[%c0_29, %c160] : memref<32x320xbf16, #tpu.memory_space<vmem>>, vector<32x64xbf16>
    %79 = arith.truncf %77 : vector<64x32xf32> to vector<64x32xbf16>
    %cst_30 = arith.constant dense<0.000000e+00> : vector<64x64xf32>
    %80 = tpu.matmul %79, %78, %cst_30 {dimension_numbers = #tpu.dot_dimension_numbers<[1], [0], [0], [1], [0, 0, 1, 1], [], []>} : vector<64x32xbf16>, vector<32x64xbf16>, vector<64x64xf32> -> vector<64x64xf32>
    %c3 = arith.constant 3 : index
    %c0_31 = arith.constant 0 : index
    %81 = vector.load %arg6[%c3, %c0_31] : memref<13x96xf32, #tpu.memory_space<vmem>>, vector<1x64xf32>
    %82 = vector.broadcast %81 : vector<1x64xf32> to vector<64x64xf32>
    %83 = arith.addf %80, %82 : vector<64x64xf32>
    %84 = vector.extract_strided_slice %83 {offsets = [0, 0], sizes = [32, 32], strides = [1, 1]} : vector<64x64xf32> to vector<32x32xf32>
    %85 = vector.extract_strided_slice %83 {offsets = [32, 32], sizes = [32, 32], strides = [1, 1]} : vector<64x64xf32> to vector<32x32xf32>
    %86 = arith.addf %75, %2 : vector<16x32xf32>
    %c0_32 = arith.constant 0 : index
    %c128 = arith.constant 128 : index
    %87 = vector.load %arg4[%c0_32, %c128] : memref<32x320xbf16, #tpu.memory_space<vmem>>, vector<32x32xbf16>
    %88 = arith.truncf %86 : vector<16x32xf32> to vector<16x32xbf16>
    %cst_33 = arith.constant dense<0.000000e+00> : vector<16x32xf32>
    %89 = tpu.matmul %88, %87, %cst_33 {dimension_numbers = #tpu.dot_dimension_numbers<[1], [0], [0], [1], [0, 0, 1, 1], [], []>} : vector<16x32xbf16>, vector<32x32xbf16>, vector<16x32xf32> -> vector<16x32xf32>
    %c2 = arith.constant 2 : index
    %c0_34 = arith.constant 0 : index
    %90 = vector.load %arg6[%c2, %c0_34] : memref<13x96xf32, #tpu.memory_space<vmem>>, vector<1x32xf32>
    %91 = vector.broadcast %90 : vector<1x32xf32> to vector<16x32xf32>
    %92 = arith.addf %89, %91 : vector<16x32xf32>
    %c0_35 = arith.constant 0 : index
    %c0_36 = arith.constant 0 : index
    %93 = vector.load %arg9[%c0_35, %c0_36] : memref<64x32xf32, #tpu.memory_space<vmem>>, vector<64x32xf32>
    %94 = vector.shape_cast %92 : vector<16x32xf32> to vector<1x16x32xf32>
    %95 = vector.shape_cast %94 : vector<1x16x32xf32> to vector<1x16x32xf32>
    %96 = vector.broadcast %95 : vector<1x16x32xf32> to vector<4x16x32xf32>
    %97 = vector.shape_cast %96 : vector<4x16x32xf32> to vector<64x32xf32>
    %98 = arith.mulf %97, %4 : vector<64x32xf32>
    %99 = arith.truncf %98 : vector<64x32xf32> to vector<64x32xbf16>
    %100 = arith.truncf %84 : vector<32x32xf32> to vector<32x32xbf16>
    %cst_37 = arith.constant dense<0.000000e+00> : vector<64x32xf32>
    %101 = tpu.matmul %99, %100, %cst_37 {dimension_numbers = #tpu.dot_dimension_numbers<[1], [1], [0], [0], [0, 0, 1, 0], [], []>} : vector<64x32xbf16>, vector<32x32xbf16>, vector<64x32xf32> -> vector<64x32xf32>
    %102 = arith.addf %101, %93 : vector<64x32xf32>
    %cst_38 = arith.constant dense<0xFF800000> : vector<64xf32>
    %103 = vector.multi_reduction <maximumf>, %102, %cst_38 [1] : vector<64x32xf32> to vector<64xf32>
    %104 = vector.shape_cast %103 : vector<64xf32> to vector<64x1xf32>
    %105 = vector.broadcast %104 : vector<64x1xf32> to vector<64x32xf32>
    %106 = arith.subf %102, %105 : vector<64x32xf32>
    %107 = math.exp %106 : vector<64x32xf32>
    %cst_39 = arith.constant dense<0.000000e+00> : vector<64xf32>
    %108 = vector.multi_reduction <add>, %107, %cst_39 [1] : vector<64x32xf32> to vector<64xf32>
    %109 = vector.shape_cast %108 : vector<64xf32> to vector<64x1xf32>
    %110 = tpu.reciprocal %109 {approx = true} : vector<64x1xf32> -> vector<64x1xf32>
    %111 = vector.broadcast %110 : vector<64x1xf32> to vector<64x32xf32>
    %112 = arith.mulf %107, %111 : vector<64x32xf32>
    %113 = arith.truncf %112 : vector<64x32xf32> to vector<64x32xbf16>
    %114 = arith.truncf %85 : vector<32x32xf32> to vector<32x32xbf16>
    %cst_40 = arith.constant dense<0.000000e+00> : vector<64x32xf32>
    %115 = tpu.matmul %113, %114, %cst_40 {dimension_numbers = #tpu.dot_dimension_numbers<[1], [0], [0], [1], [0, 0, 1, 1], [], []>} : vector<64x32xbf16>, vector<32x32xbf16>, vector<64x32xf32> -> vector<64x32xf32>
    %116 = arith.mulf %115, %4 : vector<64x32xf32>
    %117 = vector.extract_strided_slice %116 {offsets = [0, 0], sizes = [16, 32], strides = [1, 1]} : vector<64x32xf32> to vector<16x32xf32>
    %118 = vector.extract_strided_slice %116 {offsets = [16, 0], sizes = [16, 32], strides = [1, 1]} : vector<64x32xf32> to vector<16x32xf32>
    %119 = arith.addf %117, %118 : vector<16x32xf32>
    %120 = vector.extract_strided_slice %116 {offsets = [32, 0], sizes = [16, 32], strides = [1, 1]} : vector<64x32xf32> to vector<16x32xf32>
    %121 = arith.addf %119, %120 : vector<16x32xf32>
    %122 = vector.extract_strided_slice %116 {offsets = [48, 0], sizes = [16, 32], strides = [1, 1]} : vector<64x32xf32> to vector<16x32xf32>
    %123 = arith.addf %121, %122 : vector<16x32xf32>
    %c0_41 = arith.constant 0 : index
    %c224 = arith.constant 224 : index
    %124 = vector.load %arg4[%c0_41, %c224] : memref<32x320xbf16, #tpu.memory_space<vmem>>, vector<32x32xbf16>
    %125 = arith.truncf %123 : vector<16x32xf32> to vector<16x32xbf16>
    %cst_42 = arith.constant dense<0.000000e+00> : vector<16x32xf32>
    %126 = tpu.matmul %125, %124, %cst_42 {dimension_numbers = #tpu.dot_dimension_numbers<[1], [0], [0], [1], [0, 0, 1, 1], [], []>} : vector<16x32xbf16>, vector<32x32xbf16>, vector<16x32xf32> -> vector<16x32xf32>
    %c4 = arith.constant 4 : index
    %c0_43 = arith.constant 0 : index
    %127 = vector.load %arg6[%c4, %c0_43] : memref<13x96xf32, #tpu.memory_space<vmem>>, vector<1x32xf32>
    %128 = vector.broadcast %127 : vector<1x32xf32> to vector<16x32xf32>
    %129 = arith.addf %126, %128 : vector<16x32xf32>
    %130 = arith.addf %75, %129 : vector<16x32xf32>
    %c9 = arith.constant 9 : index
    %c0_44 = arith.constant 0 : index
    %131 = vector.load %arg6[%c9, %c0_44] : memref<13x96xf32, #tpu.memory_space<vmem>>, vector<1x32xf32>
    %c10 = arith.constant 10 : index
    %c0_45 = arith.constant 0 : index
    %132 = vector.load %arg6[%c10, %c0_45] : memref<13x96xf32, #tpu.memory_space<vmem>>, vector<1x32xf32>
    %cst_46 = arith.constant dense<0.000000e+00> : vector<16xf32>
    %133 = vector.multi_reduction <add>, %130, %cst_46 [1] : vector<16x32xf32> to vector<16xf32>
    %134 = vector.shape_cast %133 : vector<16xf32> to vector<16x1xf32>
    %cst_47 = arith.constant 3.200000e+01 : f32
    %135 = vector.broadcast %cst_47 : f32 to vector<16x1xf32>
    %136 = arith.divf %134, %135 : vector<16x1xf32>
    %137 = vector.broadcast %136 : vector<16x1xf32> to vector<16x32xf32>
    %138 = arith.subf %130, %137 : vector<16x32xf32>
    %139 = arith.mulf %138, %138 : vector<16x32xf32>
    %cst_48 = arith.constant dense<0.000000e+00> : vector<16xf32>
    %140 = vector.multi_reduction <add>, %139, %cst_48 [1] : vector<16x32xf32> to vector<16xf32>
    %141 = vector.shape_cast %140 : vector<16xf32> to vector<16x1xf32>
    %cst_49 = arith.constant 3.200000e+01 : f32
    %142 = vector.broadcast %cst_49 : f32 to vector<16x1xf32>
    %143 = arith.divf %141, %142 : vector<16x1xf32>
    %cst_50 = arith.constant 9.99999974E-6 : f32
    %144 = vector.broadcast %cst_50 : f32 to vector<16x1xf32>
    %145 = arith.addf %143, %144 : vector<16x1xf32>
    %146 = math.rsqrt %145 : vector<16x1xf32>
    %147 = vector.broadcast %146 : vector<16x1xf32> to vector<16x32xf32>
    %148 = arith.mulf %138, %147 : vector<16x32xf32>
    %149 = vector.broadcast %131 : vector<1x32xf32> to vector<16x32xf32>
    %150 = arith.mulf %148, %149 : vector<16x32xf32>
    %151 = vector.broadcast %132 : vector<1x32xf32> to vector<16x32xf32>
    %152 = arith.addf %150, %151 : vector<16x32xf32>
    %c0_51 = arith.constant 0 : index
    %c256 = arith.constant 256 : index
    %153 = vector.load %arg4[%c0_51, %c256] : memref<32x320xbf16, #tpu.memory_space<vmem>>, vector<32x64xbf16>
    %154 = arith.truncf %152 : vector<16x32xf32> to vector<16x32xbf16>
    %cst_52 = arith.constant dense<0.000000e+00> : vector<16x64xf32>
    %155 = tpu.matmul %154, %153, %cst_52 {dimension_numbers = #tpu.dot_dimension_numbers<[1], [0], [0], [1], [0, 0, 1, 1], [], []>} : vector<16x32xbf16>, vector<32x64xbf16>, vector<16x64xf32> -> vector<16x64xf32>
    %c5 = arith.constant 5 : index
    %c0_53 = arith.constant 0 : index
    %156 = vector.load %arg6[%c5, %c0_53] : memref<13x96xf32, #tpu.memory_space<vmem>>, vector<1x64xf32>
    %157 = vector.broadcast %156 : vector<1x64xf32> to vector<16x64xf32>
    %158 = arith.addf %155, %157 : vector<16x64xf32>
    %cst_54 = arith.constant 0.000000e+00 : f32
    %159 = vector.broadcast %cst_54 : f32 to vector<16x64xf32>
    %160 = arith.maximumf %158, %159 : vector<16x64xf32>
    %c0_55 = arith.constant 0 : index
    %c0_56 = arith.constant 0 : index
    %161 = vector.load %arg5[%c0_55, %c0_56] : memref<64x32xbf16, #tpu.memory_space<vmem>>, vector<64x32xbf16>
    %162 = arith.truncf %160 : vector<16x64xf32> to vector<16x64xbf16>
    %cst_57 = arith.constant dense<0.000000e+00> : vector<16x32xf32>
    %163 = tpu.matmul %162, %161, %cst_57 {dimension_numbers = #tpu.dot_dimension_numbers<[1], [0], [0], [1], [0, 0, 1, 1], [], []>} : vector<16x64xbf16>, vector<64x32xbf16>, vector<16x32xf32> -> vector<16x32xf32>
    %c6 = arith.constant 6 : index
    %c0_58 = arith.constant 0 : index
    %164 = vector.load %arg6[%c6, %c0_58] : memref<13x96xf32, #tpu.memory_space<vmem>>, vector<1x32xf32>
    %165 = vector.broadcast %164 : vector<1x32xf32> to vector<16x32xf32>
    %166 = arith.addf %163, %165 : vector<16x32xf32>
    %167 = arith.addf %152, %166 : vector<16x32xf32>
    %c11 = arith.constant 11 : index
    %c0_59 = arith.constant 0 : index
    %168 = vector.load %arg6[%c11, %c0_59] : memref<13x96xf32, #tpu.memory_space<vmem>>, vector<1x32xf32>
    %c12 = arith.constant 12 : index
    %c0_60 = arith.constant 0 : index
    %169 = vector.load %arg6[%c12, %c0_60] : memref<13x96xf32, #tpu.memory_space<vmem>>, vector<1x32xf32>
    %cst_61 = arith.constant dense<0.000000e+00> : vector<16xf32>
    %170 = vector.multi_reduction <add>, %167, %cst_61 [1] : vector<16x32xf32> to vector<16xf32>
    %171 = vector.shape_cast %170 : vector<16xf32> to vector<16x1xf32>
    %cst_62 = arith.constant 3.200000e+01 : f32
    %172 = vector.broadcast %cst_62 : f32 to vector<16x1xf32>
    %173 = arith.divf %171, %172 : vector<16x1xf32>
    %174 = vector.broadcast %173 : vector<16x1xf32> to vector<16x32xf32>
    %175 = arith.subf %167, %174 : vector<16x32xf32>
    %176 = arith.mulf %175, %175 : vector<16x32xf32>
    %cst_63 = arith.constant dense<0.000000e+00> : vector<16xf32>
    %177 = vector.multi_reduction <add>, %176, %cst_63 [1] : vector<16x32xf32> to vector<16xf32>
    %178 = vector.shape_cast %177 : vector<16xf32> to vector<16x1xf32>
    %cst_64 = arith.constant 3.200000e+01 : f32
    %179 = vector.broadcast %cst_64 : f32 to vector<16x1xf32>
    %180 = arith.divf %178, %179 : vector<16x1xf32>
    %cst_65 = arith.constant 9.99999974E-6 : f32
    %181 = vector.broadcast %cst_65 : f32 to vector<16x1xf32>
    %182 = arith.addf %180, %181 : vector<16x1xf32>
    %183 = math.rsqrt %182 : vector<16x1xf32>
    %184 = vector.broadcast %183 : vector<16x1xf32> to vector<16x32xf32>
    %185 = arith.mulf %175, %184 : vector<16x32xf32>
    %186 = vector.broadcast %168 : vector<1x32xf32> to vector<16x32xf32>
    %187 = arith.mulf %185, %186 : vector<16x32xf32>
    %188 = vector.broadcast %169 : vector<1x32xf32> to vector<16x32xf32>
    %189 = arith.addf %187, %188 : vector<16x32xf32>
    %c0_66 = arith.constant 0 : index
    %c0_67 = arith.constant 0 : index
    %190 = vector.load %arg10[%c0_66, %c0_67] : memref<16x32xf32, #tpu.memory_space<vmem>>, vector<16x32xf32>
    tpu.vector_store %arg10[%c0_66, %c0_67], %189 {strides = array<i32>} : memref<16x32xf32, #tpu.memory_space<vmem>>, vector<16x32xf32>,
    return
  }
}

</mosaic_0001>

<llo_original>
// kernel: transformer_decoder_layer.1
$region0: #{transformer_decoder_layer.1}
  #allocation0 [shape = 'u32[]', space=smem, size = 0x4, offset = 0x4, fixed_abs, tag = 'smem constant byte address 0x4 - core index']
  #allocation1 [shape = 'u32[144,128]{1,0:T(1,128)}', space=vmem, size = 0x12000, scoped, tag = 'internal scratch']
  %s0 = inlined_call_operand.hbm [shape: f32[16,32], index: 0, kind: input, shape index: {}]
  %s1 = inlined_call_operand.hbm [shape: f32[32,32], index: 1, kind: input, shape index: {}]
  %s2 = inlined_call_operand.hbm [shape: f32[16,32], index: 2, kind: input, shape index: {}]
  %s3 = inlined_call_operand.hbm [shape: f32[32,32], index: 3, kind: input, shape index: {}]
  %s4 = inlined_call_operand.hbm [shape: bf16[32,320], index: 4, kind: input, shape index: {}]
  %s5 = inlined_call_operand.vmem [shape: bf16[64,32], index: 5, kind: input, shape index: {}]
  %s6 = inlined_call_operand.hbm [shape: f32[13,96], index: 6, kind: input, shape index: {}]
  %s7 = inlined_call_operand.hbm [shape: f32[64,32], index: 7, kind: input, shape index: {}]
  %s8 = inlined_call_operand.hbm [shape: f32[64,16], index: 8, kind: input, shape index: {}]
  %s9 = inlined_call_operand.vmem [shape: f32[64,32], index: 9, kind: input, shape index: {}]
  %s10 = inlined_call_operand.hbm [shape: f32[16,32], index: 10, kind: output, shape index: {}]
  %s11 = sld [smem:[#allocation0]]
  $region82: #{transformer_decoder_layer.1} parent=0
    _
  %s13 = ssub.s32 1, %s11
  %s14 = scalar_select 0, %s13, %s11
  $region1: #{transformer_decoder_layer.1} parent=0
    #allocation2 [shape = 'u8[8192]{0}', space=vmem, size = 0x2000, scoped, tag = 'input window, operand 0, single buffered']
    #allocation3 [shape = 's32[1]{0}', space=sflag, size = 0x4, scoped, tag = 'scoped memory for transformer_decoder_layer.1']
    #allocation4 [shape = 's32[1]{0}', space=sflag, size = 0x4, scoped, tag = 'scoped memory for transformer_decoder_layer.1']
    #allocation5 [shape = 'u8[16384]{0}', space=vmem, size = 0x4000, scoped, tag = 'input window, operand 1, single buffered']
    #allocation6 [shape = 's32[1]{0}', space=sflag, size = 0x4, scoped, tag = 'scoped memory for transformer_decoder_layer.1']
    #allocation7 [shape = 'u8[8192]{0}', space=vmem, size = 0x2000, scoped, tag = 'input window, operand 2, single buffered']
    #allocation8 [shape = 'u8[16384]{0}', space=vmem, size = 0x4000, scoped, tag = 'input window, operand 3, single buffered']
    #allocation9 [shape = 's32[1]{0}', space=sflag, size = 0x4, scoped, tag = 'scoped memory for transformer_decoder_layer.1']
    #allocation10 [shape = 'u8[24576]{0}', space=vmem, size = 0x6000, scoped, tag = 'input window, operand 4, single buffered']
    #allocation11 [shape = 'u8[8192]{0}', space=vmem, size = 0x2000, scoped, tag = 'input window, operand 6, single buffered']
    #allocation12 [shape = 's32[1]{0}', space=sflag, size = 0x4, scoped, tag = 'scoped memory for transformer_decoder_layer.1']
    #allocation13 [shape = 'u8[32768]{0}', space=vmem, size = 0x8000, scoped, tag = 'input window, operand 7, single buffered']
    #allocation14 [shape = 'u8[32768]{0}', space=vmem, size = 0x8000, scoped, tag = 'input window, operand 8, single buffered']
    #allocation15 [shape = 's32[1]{0}', space=sflag, size = 0x4, scoped, tag = 'scoped memory for transformer_decoder_layer.1']
    #allocation16 [shape = 'u8[8192]{0}', space=vmem, size = 0x2000, scoped, tag = 'output window, operand 0, single buffered']
    %15 = vsyncpa [#allocation3], 0
    %16 = vsyncpa [#allocation6], 0
    %17 = vsyncpa [#allocation9], 0
    %18 = vsyncpa [#allocation12], 0
    %19 = vsyncpa [#allocation15], 0
    %20 = vsyncpa [#allocation4], 0
    // Predicated region
    $region2: #{transformer_decoder_layer.1} parent=1 // pred_check
      _
    $region3: #{transformer_decoder_layer.1} parent=1 // pred_check_branch
      %22 = sbr.rel (0) target = $region5
    $region4: #{transformer_decoder_layer.1} parent=1 // pred_region
      %s24 = ssub.s32 256, 256
      %25 = vsyncadd [#allocation3], %s24
      %s26 = sshll.u32 [#allocation2], 4
      %s27 = int_to_ptr.vmem [resolvable:$true] %s26
      %32 = dma.hbm_to_vmem [thread:$0]  %s0, 256, %s27, [#allocation3], 128, 128, 8
    $region5: #{transformer_decoder_layer.1} parent=1 // pred_fallthru
      _
    // Predicated region
    $region6: #{transformer_decoder_layer.1} parent=1 // pred_check
      _
    $region7: #{transformer_decoder_layer.1} parent=1 // pred_check_branch
      %34 = sbr.rel (0) target = $region9
    $region8: #{transformer_decoder_layer.1} parent=1 // pred_region
      %s36 = ssub.s32 512, 512
      %37 = vsyncadd [#allocation6], %s36
      %s38 = sshll.u32 [#allocation5], 4
      %s39 = int_to_ptr.vmem [resolvable:$true] %s38
      %44 = dma.hbm_to_vmem [thread:$0]  %s1, 512, %s39, [#allocation6], 128, 128, 8
    $region9: #{transformer_decoder_layer.1} parent=1 // pred_fallthru
      _
    // Predicated region
    $region10: #{transformer_decoder_layer.1} parent=1 // pred_check
      _
    $region11: #{transformer_decoder_layer.1} parent=1 // pred_check_branch
      %46 = sbr.rel (0) target = $region13
    $region12: #{transformer_decoder_layer.1} parent=1 // pred_region
      %s48 = ssub.s32 256, 256
      %49 = vsyncadd [#allocation6], %s48
      %s50 = sshll.u32 [#allocation7], 4
      %s51 = int_to_ptr.vmem [resolvable:$true] %s50
      %56 = dma.hbm_to_vmem [thread:$0]  %s2, 256, %s51, [#allocation6], 128, 128, 8
    $region13: #{transformer_decoder_layer.1} parent=1 // pred_fallthru
      _
    // Predicated region
    $region14: #{transformer_decoder_layer.1} parent=1 // pred_check
      _
    $region15: #{transformer_decoder_layer.1} parent=1 // pred_check_branch
      %58 = sbr.rel (0) target = $region17
    $region16: #{transformer_decoder_layer.1} parent=1 // pred_region
      %s60 = ssub.s32 512, 512
      %61 = vsyncadd [#allocation9], %s60
      %s62 = sshll.u32 [#allocation8], 4
      %s63 = int_to_ptr.vmem [resolvable:$true] %s62
      %68 = dma.hbm_to_vmem [thread:$0]  %s3, 512, %s63, [#allocation9], 128, 128, 8
    $region17: #{transformer_decoder_layer.1} parent=1 // pred_fallthru
      _
    // Predicated region
    $region18: #{transformer_decoder_layer.1} parent=1 // pred_check
      _
    $region19: #{transformer_decoder_layer.1} parent=1 // pred_check_branch
      %70 = sbr.rel (0) target = $region21
    $region20: #{transformer_decoder_layer.1} parent=1 // pred_region
      %s72 = ssub.s32 768, 768
      %73 = vsyncadd [#allocation9], %s72
      %s74 = sshll.u32 [#allocation10], 4
      %s75 = int_to_ptr.vmem [resolvable:$true] %s74
      %80 = dma.hbm_to_vmem [thread:$0]  %s4, 768, %s75, [#allocation9], 192, 192, 12
    $region21: #{transformer_decoder_layer.1} parent=1 // pred_fallthru
      _
    // Predicated region
    $region22: #{transformer_decoder_layer.1} parent=1 // pred_check
      _
    $region23: #{transformer_decoder_layer.1} parent=1 // pred_check_branch
      %82 = sbr.rel (0) target = $region25
    $region24: #{transformer_decoder_layer.1} parent=1 // pred_region
      _
    $region25: #{transformer_decoder_layer.1} parent=1 // pred_fallthru
      _
    // Predicated region
    $region26: #{transformer_decoder_layer.1} parent=1 // pred_check
      _
    $region27: #{transformer_decoder_layer.1} parent=1 // pred_check_branch
      %84 = sbr.rel (0) target = $region29
    $region28: #{transformer_decoder_layer.1} parent=1 // pred_region
      %s86 = ssub.s32 256, 256
      %87 = vsyncadd [#allocation12], %s86
      %s88 = sshll.u32 [#allocation11], 4
      %s89 = int_to_ptr.vmem [resolvable:$true] %s88
      %94 = dma.hbm_to_vmem [thread:$0]  %s6, 256, %s89, [#allocation12], 128, 128, 8
    $region29: #{transformer_decoder_layer.1} parent=1 // pred_fallthru
      _
    // Predicated region
    $region30: #{transformer_decoder_layer.1} parent=1 // pred_check
      _
    $region31: #{transformer_decoder_layer.1} parent=1 // pred_check_branch
      %96 = sbr.rel (0) target = $region33
    $region32: #{transformer_decoder_layer.1} parent=1 // pred_region
      %s98 = ssub.s32 1024, 1024
      %99 = vsyncadd [#allocation12], %s98
      %s100 = sshll.u32 [#allocation13], 4
      %s101 = int_to_ptr.vmem [resolvable:$true] %s100
      %106 = dma.hbm_to_vmem [thread:$0]  %s7, 1024, %s101, [#allocation12], 128, 128, 8
    $region33: #{transformer_decoder_layer.1} parent=1 // pred_fallthru
      _
    // Predicated region
    $region34: #{transformer_decoder_layer.1} parent=1 // pred_check
      _
    $region35: #{transformer_decoder_layer.1} parent=1 // pred_check_branch
      %108 = sbr.rel (0) target = $region37
    $region36: #{transformer_decoder_layer.1} parent=1 // pred_region
      %s110 = ssub.s32 1024, 1024
      %111 = vsyncadd [#allocation15], %s110
      %s112 = sshll.u32 [#allocation14], 4
      %s113 = int_to_ptr.vmem [resolvable:$true] %s112
      %118 = dma.hbm_to_vmem [thread:$0]  %s8, 1024, %s113, [#allocation15], 128, 128, 8
    $region37: #{transformer_decoder_layer.1} parent=1 // pred_fallthru
      _
    // Predicated region
    $region38: #{transformer_decoder_layer.1} parent=1 // pred_check
      _
    $region39: #{transformer_decoder_layer.1} parent=1 // pred_check_branch
      %120 = sbr.rel (0) target = $region41
    $region40: #{transformer_decoder_layer.1} parent=1 // pred_region
      _
    $region41: #{transformer_decoder_layer.1} parent=1 // pred_fallthru
      _
    // Predicated region
    $region42: #{transformer_decoder_layer.1} parent=1 // pred_check
      _
    $region43: #{transformer_decoder_layer.1} parent=1 // pred_check_branch
      %122 = sbr.rel (0) target = $region45
    $region44: #{transformer_decoder_layer.1} parent=1 // pred_region
      %123 = dma.done [#allocation3], 256
    $region45: #{transformer_decoder_layer.1} parent=1 // pred_fallthru
      _
    // Predicated region
    $region46: #{transformer_decoder_layer.1} parent=1 // pred_check
      _
    $region47: #{transformer_decoder_layer.1} parent=1 // pred_check_branch
      %125 = sbr.rel (0) target = $region49
    $region48: #{transformer_decoder_layer.1} parent=1 // pred_region
      %126 = dma.done [#allocation6], 512
    $region49: #{transformer_decoder_layer.1} parent=1 // pred_fallthru
      _
    // Predicated region
    $region50: #{transformer_decoder_layer.1} parent=1 // pred_check
      _
    $region51: #{transformer_decoder_layer.1} parent=1 // pred_check_branch
      %128 = sbr.rel (0) target = $region53
    $region52: #{transformer_decoder_layer.1} parent=1 // pred_region
      %129 = dma.done [#allocation6], 256
    $region53: #{transformer_decoder_layer.1} parent=1 // pred_fallthru
      _
    // Predicated region
    $region54: #{transformer_decoder_layer.1} parent=1 // pred_check
      _
    $region55: #{transformer_decoder_layer.1} parent=1 // pred_check_branch
      %131 = sbr.rel (0) target = $region57
    $region56: #{transformer_decoder_layer.1} parent=1 // pred_region
      %132 = dma.done [#allocation9], 512
    $region57: #{transformer_decoder_layer.1} parent=1 // pred_fallthru
      _
    // Predicated region
    $region58: #{transformer_decoder_layer.1} parent=1 // pred_check
      _
    $region59: #{transformer_decoder_layer.1} parent=1 // pred_check_branch
      %134 = sbr.rel (0) target = $region61
    $region60: #{transformer_decoder_layer.1} parent=1 // pred_region
      %135 = dma.done [#allocation9], 768
    $region61: #{transformer_decoder_layer.1} parent=1 // pred_fallthru
      _
    // Predicated region
    $region62: #{transformer_decoder_layer.1} parent=1 // pred_check
      _
    $region63: #{transformer_decoder_layer.1} parent=1 // pred_check_branch
      %137 = sbr.rel (0) target = $region65
    $region64: #{transformer_decoder_layer.1} parent=1 // pred_region
      %138 = dma.done [#allocation12], 256
    $region65: #{transformer_decoder_layer.1} parent=1 // pred_fallthru
      _
    // Predicated region
    $region66: #{transformer_decoder_layer.1} parent=1 // pred_check
      _
    $region67: #{transformer_decoder_layer.1} parent=1 // pred_check_branch
      %140 = sbr.rel (0) target = $region69
    $region68: #{transformer_decoder_layer.1} parent=1 // pred_region
      %141 = dma.done [#allocation12], 1024
    $region69: #{transformer_decoder_layer.1} parent=1 // pred_fallthru
      _
    // Predicated region
    $region70: #{transformer_decoder_layer.1} parent=1 // pred_check
      _
    $region71: #{transformer_decoder_layer.1} parent=1 // pred_check_branch
      %143 = sbr.rel (0) target = $region73
    $region72: #{transformer_decoder_layer.1} parent=1 // pred_region
      %144 = dma.done [#allocation15], 1024
    $region73: #{transformer_decoder_layer.1} parent=1 // pred_fallthru
      _
    %v146 = vld [vmem:[#allocation2] sm:$0xff]
    %v147 = vld [vmem:[#allocation2 + $0x8] sm:$0xff]
    %v148 = vld [vmem:[#allocation5] sm:$0xff]
    %v149 = vld [vmem:[#allocation5 + $0x8] sm:$0xff]
    %v150 = vld [vmem:[#allocation5 + $0x10] sm:$0xff]
    %v151 = vld [vmem:[#allocation5 + $0x18] sm:$0xff]
    %v152 = vld [vmem:[#allocation7] sm:$0xff]
    %v153 = vld [vmem:[#allocation7 + $0x8] sm:$0xff]
    %v154 = vld [vmem:[#allocation8] sm:$0xff]
    %v155 = vld [vmem:[#allocation8 + $0x8] sm:$0xff]
    %v156 = vld [vmem:[#allocation8 + $0x10] sm:$0xff]
    %v157 = vld [vmem:[#allocation8 + $0x18] sm:$0xff]
    %v158 = vld [vmem:[#allocation13] sm:$0xff]
    %v159 = vld [vmem:[#allocation13 + $0x8] sm:$0xff]
    %v160 = vld [vmem:[#allocation13 + $0x10] sm:$0xff]
    %v161 = vld [vmem:[#allocation13 + $0x18] sm:$0xff]
    %v162 = vld [vmem:[#allocation13 + $0x20] sm:$0xff]
    %v163 = vld [vmem:[#allocation13 + $0x28] sm:$0xff]
    %v164 = vld [vmem:[#allocation13 + $0x30] sm:$0xff]
    %v165 = vld [vmem:[#allocation13 + $0x38] sm:$0xff]
    %v166 = vadd.f32 %v146, %v152
    %v167 = vadd.f32 %v147, %v153
    %v168 = vld [vmem:[#allocation10] sm:$0xf]
    %v169 = vld [vmem:[#allocation10 + $0xc] sm:$0xf]
    %v170 = vld [vmem:[#allocation10 + $0x18] sm:$0xf]
    %v171 = vld [vmem:[#allocation10 + $0x24] sm:$0xf]
    %v172 = vpack.c.bf16 %v167, %v166
    %v173 = vpack.c.bf16 %v147, %v146
    %v174 = vld [vmem:[#allocation11] sm:$0x1]
    %v175 = vlaneseq
    %v176 = vshrl.u32 %v175, 7
    %v177 = vsub.s32 0, %v176
    %v178 = vrot.slane %v174, %v177
    %v183 = vunpack.c.l.b16 %v168
    %v184 = vunpack.c.l.b16 %v169
    %v185 = vunpack.c.l.b16 %v170
    %v186 = vunpack.c.l.b16 %v171
    %v187 = vpack.c.b16 %v184, %v183
    %v188 = vpack.c.b16 %v186, %v185
    %vm191 = vcmask 261120
    %v193 = vsel %vm191, %v172, 0
    %v196 = vsel %vm191, %v173, 0
    %198 = vmatprep.subr.bf16.mxu0 0
    %199 = vmatpush1.bf16.msra.mxu0 0
    %200 = vmatprep.subr.bf16.mxu0 0
    %201 = vmatpush1.bf16.msra.mxu0 0
    %202 = vmatprep.subr.bf16.mxu0 0
    %203 = vmatpush1.bf16.msra.mxu0 0
    %204 = vmatprep.subr.bf16.mxu0 0
    %205 = vmatpush1.bf16.msra.mxu0 0
    %206 = vmatprep.subr.bf16.mxu0 0
    %207 = vmatpush1.bf16.msra.mxu0 0
    %208 = vmatprep.subr.bf16.mxu0 0
    %209 = vmatpush1.bf16.msra.mxu0 0
    %210 = vmatprep.subr.bf16.mxu0 0
    %211 = vmatpush1.bf16.msra.mxu0 %v188
    %212 = vmatprep.subr.bf16.mxu0 0
    %213 = vmatpush1.bf16.msra.mxu0 %v187
    %214 = vmatprep.subr.bf16.mxu0 0
    %215 = vmatpush2.bf16.msra.mxu0 0
    %216 = vmatprep.subr.bf16.mxu0 0
    %217 = vmatpush2.bf16.msra.mxu0 0
    %218 = vmatprep.subr.bf16.mxu0 0
    %219 = vmatpush2.bf16.msra.mxu0 0
    %220 = vmatprep.subr.bf16.mxu0 0
    %221 = vmatpush2.bf16.msra.mxu0 0
    %222 = vmatprep.subr.bf16.mxu0 0
    %223 = vmatpush2.bf16.msra.mxu0 0
    %224 = vmatprep.subr.bf16.mxu0 0
    %225 = vmatpush2.bf16.msra.mxu0 0
    %226 = vmatprep.subr.bf16.mxu0 0
    %227 = vmatpush2.bf16.msra.mxu0 0
    %228 = vmatprep.subr.bf16.mxu0 0
    %229 = vmatpush2.bf16.msra.mxu0 0
    %230 = vmatprep.mubr.bf16.mxu0 0
    %231 = vmatmul.mubr.bf16.gmra.mxu0 %v193
    %v232 = vpop.f32.mrf.mxu0
    %v233 = vadd.f32 %v178, %v232
    %v234 = vpop.f32.mrf.mxu0
    %v235 = vpop.f32.mrf.mxu0
    %v236 = vadd.f32 %v178, %v235
    %v237 = vpop.f32.mrf.mxu0
    %238 = vmatprep.mubr.bf16.mxu0 0
    %239 = vmatmul.mubr.bf16.gmra.mxu0 %v196
    %v240 = vpop.f32.mrf.mxu0
    %v241 = vadd.f32 %v178, %v240
    %v242 = vpop.f32.mrf.mxu0
    %v243 = vpop.f32.mrf.mxu0
    %v244 = vadd.f32 %v178, %v243
    %v245 = vpop.f32.mrf.mxu0
    %246 = vdwg.mxu0
    %v247 = vld [vmem:[#allocation14] sm:$0xff]
    %v248 = vld [vmem:[#allocation14 + $0x8] sm:$0xff]
    %v249 = vld [vmem:[#allocation14 + $0x10] sm:$0xff]
    %v250 = vld [vmem:[#allocation14 + $0x18] sm:$0xff]
    %v251 = vld [vmem:[#allocation14 + $0x20] sm:$0xff]
    %v252 = vld [vmem:[#allocation14 + $0x28] sm:$0xff]
    %v253 = vld [vmem:[#allocation14 + $0x30] sm:$0xff]
    %v254 = vld [vmem:[#allocation14 + $0x38] sm:$0xff]
    %v255 = vmul.f32 %v233, %v158
    %v256 = vmul.f32 %v236, %v159
    %v257 = vmul.f32 %v233, %v160
    %v258 = vmul.f32 %v236, %v161
    %v259 = vmul.f32 %v233, %v162
    %v260 = vmul.f32 %v236, %v163
    %v261 = vmul.f32 %v233, %v164
    %v262 = vmul.f32 %v236, %v165
    %v263 = vpack.c.bf16 %v256, %v255
    %v264 = vpack.c.bf16 %v258, %v257
    %v265 = vpack.c.bf16 %v260, %v259
    %v266 = vpack.c.bf16 %v262, %v261
    %v267 = vpack.c.bf16 %v236, %v233
    %269 = vrot.lane.b32.xlu0 %v267, 96
    %v270 = vpop.permute.xlu0 %269
    %v272 = vsel %vm191, %v263, 0
    %v275 = vsel %vm191, %v264, 0
    %v278 = vsel %vm191, %v265, 0
    %v281 = vsel %vm191, %v266, 0
    %v284 = vsel %vm191, %v270, 0
    %286 = vmatprep.subr.bf16.mxu0 0
    %287 = vmatpush1.bf16.xpose.msra.mxu0 0
    %288 = vmatprep.subr.bf16.mxu0 0
    %289 = vmatpush1.bf16.xpose.msra.mxu0 0
    %290 = vmatprep.subr.bf16.mxu0 0
    %291 = vmatpush1.bf16.xpose.msra.mxu0 0
    %292 = vmatprep.subr.bf16.mxu0 0
    %293 = vmatpush1.bf16.xpose.msra.mxu0 0
    %294 = vmatprep.subr.bf16.mxu0 0
    %295 = vmatpush1.bf16.xpose.msra.mxu0 0
    %296 = vmatprep.subr.bf16.mxu0 0
    %297 = vmatpush1.bf16.xpose.msra.mxu0 0
    %298 = vmatprep.subr.bf16.mxu0 0
    %299 = vmatpush1.bf16.xpose.msra.mxu0 0
    %300 = vmatprep.subr.bf16.mxu0 0
    %301 = vmatpush1.bf16.xpose.msra.mxu0 %v284
    %302 = vmatprep.subr.bf16.mxu0 0
    %303 = vmatpush2.bf16.xpose.msra.mxu0 0
    %304 = vmatprep.subr.bf16.mxu0 0
    %305 = vmatpush2.bf16.xpose.msra.mxu0 0
    %306 = vmatprep.subr.bf16.mxu0 0
    %307 = vmatpush2.bf16.xpose.msra.mxu0 0
    %308 = vmatprep.subr.bf16.mxu0 0
    %309 = vmatpush2.bf16.xpose.msra.mxu0 0
    %310 = vmatprep.subr.bf16.mxu0 0
    %311 = vmatpush2.bf16.xpose.msra.mxu0 0
    %312 = vmatprep.subr.bf16.mxu0 0
    %313 = vmatpush2.bf16.xpose.msra.mxu0 0
    %314 = vmatprep.subr.bf16.mxu0 0
    %315 = vmatpush2.bf16.xpose.msra.mxu0 0
    %316 = vmatprep.subr.bf16.mxu0 0
    %317 = vmatpush2.bf16.xpose.msra.mxu0 0
    %318 = vmatprep.mubr.bf16.mxu0 0
    %319 = vmatmul.mubr.bf16.gmra.mxu0 %v272
    %v320 = vpop.f32.mrf.mxu0
    %v321 = vadd.f32 %v247, %v320
    %v322 = vpop.f32.mrf.mxu0
    %v323 = vpop.f32.mrf.mxu0
    %v324 = vadd.f32 %v248, %v323
    %v325 = vpop.f32.mrf.mxu0
    %326 = vmatprep.mubr.bf16.mxu0 0
    %327 = vmatmul.mubr.bf16.gmra.mxu0 %v275
    %v328 = vpop.f32.mrf.mxu0
    %v329 = vadd.f32 %v249, %v328
    %v330 = vpop.f32.mrf.mxu0
    %v331 = vpop.f32.mrf.mxu0
    %v332 = vadd.f32 %v250, %v331
    %v333 = vpop.f32.mrf.mxu0
    %334 = vmatprep.mubr.bf16.mxu0 0
    %335 = vmatmul.mubr.bf16.gmra.mxu0 %v278
    %v336 = vpop.f32.mrf.mxu0
    %v337 = vadd.f32 %v251, %v336
    %v338 = vpop.f32.mrf.mxu0
    %v339 = vpop.f32.mrf.mxu0
    %v340 = vadd.f32 %v252, %v339
    %v341 = vpop.f32.mrf.mxu0
    %342 = vmatprep.mubr.bf16.mxu0 0
    %343 = vmatmul.mubr.bf16.gmra.mxu0 %v281
    %v344 = vpop.f32.mrf.mxu0
    %v345 = vadd.f32 %v253, %v344
    %v346 = vpop.f32.mrf.mxu0
    %v347 = vpop.f32.mrf.mxu0
    %v348 = vadd.f32 %v254, %v347
    %v349 = vpop.f32.mrf.mxu0
    %350 = vdwg.mxu0
    %vm351 = vcmask 130048
    %v352 = vsel %vm351, %v321, -inf
    %353 = vmax.xlane.f32.xlu0 %v352
    %v354 = vpop.xlane.xlu0 %353
    %v355 = vsel %vm351, %v324, -inf
    %356 = vmax.xlane.f32.xlu0 %v355
    %v357 = vpop.xlane.xlu0 %356
    %v358 = vsel %vm351, %v329, -inf
    %359 = vmax.xlane.f32.xlu0 %v358
    %v360 = vpop.xlane.xlu0 %359
    %v361 = vsel %vm351, %v332, -inf
    %362 = vmax.xlane.f32.xlu0 %v361
    %v363 = vpop.xlane.xlu0 %362
    %v364 = vsel %vm351, %v337, -inf
    %365 = vmax.xlane.f32.xlu0 %v364
    %v366 = vpop.xlane.xlu0 %365
    %v367 = vsel %vm351, %v340, -inf
    %368 = vmax.xlane.f32.xlu0 %v367
    %v369 = vpop.xlane.xlu0 %368
    %v370 = vsel %vm351, %v345, -inf
    %371 = vmax.xlane.f32.xlu0 %v370
    %v372 = vpop.xlane.xlu0 %371
    %v373 = vsel %vm351, %v348, -inf
    %374 = vmax.xlane.f32.xlu0 %v373
    %v375 = vpop.xlane.xlu0 %374
    %v376 = vsub.f32 %v321, %v354
    %v377 = vsub.f32 %v324, %v357
    %v378 = vsub.f32 %v329, %v360
    %v379 = vsub.f32 %v332, %v363
    %v380 = vsub.f32 %v337, %v366
    %v381 = vsub.f32 %v340, %v369
    %v382 = vsub.f32 %v345, %v372
    %v383 = vsub.f32 %v348, %v375
    %v384 = vmul.f32 %v376, 1.442695
    %v385 = vpow.pop %v384
    %v386 = vmul.f32 %v377, 1.442695
    %v387 = vpow.pop %v386
    %v388 = vmul.f32 %v378, 1.442695
    %v389 = vpow.pop %v388
    %v390 = vmul.f32 %v379, 1.442695
    %v391 = vpow.pop %v390
    %v392 = vmul.f32 %v380, 1.442695
    %v393 = vpow.pop %v392
    %v394 = vmul.f32 %v381, 1.442695
    %v395 = vpow.pop %v394
    %v396 = vmul.f32 %v382, 1.442695
    %v397 = vpow.pop %v396
    %v398 = vmul.f32 %v383, 1.442695
    %v399 = vpow.pop %v398
    %v400 = vsel %vm351, %v385, 0.0
    %401 = vadd.xlane.f32.xlu0 %v400
    %v402 = vpop.xlane.xlu0 %401
    %v403 = vsel %vm351, %v387, 0.0
    %404 = vadd.xlane.f32.xlu0 %v403
    %v405 = vpop.xlane.xlu0 %404
    %v406 = vsel %vm351, %v389, 0.0
    %407 = vadd.xlane.f32.xlu0 %v406
    %v408 = vpop.xlane.xlu0 %407
    %v409 = vsel %vm351, %v391, 0.0
    %410 = vadd.xlane.f32.xlu0 %v409
    %v411 = vpop.xlane.xlu0 %410
    %v412 = vsel %vm351, %v393, 0.0
    %413 = vadd.xlane.f32.xlu0 %v412
    %v414 = vpop.xlane.xlu0 %413
    %v415 = vsel %vm351, %v395, 0.0
    %416 = vadd.xlane.f32.xlu0 %v415
    %v417 = vpop.xlane.xlu0 %416
    %v418 = vsel %vm351, %v397, 0.0
    %419 = vadd.xlane.f32.xlu0 %v418
    %v420 = vpop.xlane.xlu0 %419
    %v421 = vsel %vm351, %v399, 0.0
    %422 = vadd.xlane.f32.xlu0 %v421
    %v423 = vpop.xlane.xlu0 %422
    %v424 = vrcp.pop %v402
    %v425 = vrcp.pop %v405
    %v426 = vrcp.pop %v408
    %v427 = vrcp.pop %v411
    %v428 = vrcp.pop %v414
    %v429 = vrcp.pop %v417
    %v430 = vrcp.pop %v420
    %v431 = vrcp.pop %v423
    %v432 = vmul.f32 %v385, %v424
    %v433 = vmul.f32 %v387, %v425
    %v434 = vmul.f32 %v389, %v426
    %v435 = vmul.f32 %v391, %v427
    %v436 = vmul.f32 %v393, %v428
    %v437 = vmul.f32 %v395, %v429
    %v438 = vmul.f32 %v397, %v430
    %v439 = vmul.f32 %v399, %v431
    %v440 = vpack.c.bf16 %v433, %v432
    %v441 = vpack.c.bf16 %v435, %v434
    %v442 = vpack.c.bf16 %v437, %v436
    %v443 = vpack.c.bf16 %v439, %v438
    %v444 = vpack.c.bf16 %v244, %v241
    %446 = vrot.lane.b32.xlu0 %v444, 64
    %v447 = vpop.permute.xlu0 %446
    %v450 = vsel %vm351, %v440, 0
    %v453 = vsel %vm351, %v441, 0
    %v456 = vsel %vm351, %v442, 0
    %v459 = vsel %vm351, %v443, 0
    %461 = vmatprep.subr.bf16.mxu0 0
    %462 = vmatpush1.bf16.msra.mxu0 0
    %463 = vmatprep.subr.bf16.mxu0 0
    %464 = vmatpush1.bf16.msra.mxu0 0
    %465 = vmatprep.subr.bf16.mxu0 0
    %466 = vmatpush1.bf16.msra.mxu0 0
    %467 = vmatprep.subr.bf16.mxu0 0
    %468 = vmatpush1.bf16.msra.mxu0 0
    %469 = vmatprep.subr.bf16.mxu0 0
    %470 = vmatpush1.bf16.msra.mxu0 0
    %471 = vmatprep.subr.bf16.mxu0 0
    %472 = vmatpush1.bf16.msra.mxu0 0
    %473 = vmatprep.subr.bf16.mxu0 0
    %474 = vmatpush1.bf16.msra.mxu0 0
    %475 = vmatprep.subr.bf16.mxu0 0
    %476 = vmatpush1.bf16.msra.mxu0 %v447
    %477 = vmatprep.subr.bf16.mxu0 0
    %478 = vmatpush2.bf16.msra.mxu0 0
    %479 = vmatprep.subr.bf16.mxu0 0
    %480 = vmatpush2.bf16.msra.mxu0 0
    %481 = vmatprep.subr.bf16.mxu0 0
    %482 = vmatpush2.bf16.msra.mxu0 0
    %483 = vmatprep.subr.bf16.mxu0 0
    %484 = vmatpush2.bf16.msra.mxu0 0
    %485 = vmatprep.subr.bf16.mxu0 0
    %486 = vmatpush2.bf16.msra.mxu0 0
    %487 = vmatprep.subr.bf16.mxu0 0
    %488 = vmatpush2.bf16.msra.mxu0 0
    %489 = vmatprep.subr.bf16.mxu0 0
    %490 = vmatpush2.bf16.msra.mxu0 0
    %491 = vmatprep.subr.bf16.mxu0 0
    %492 = vmatpush2.bf16.msra.mxu0 0
    %493 = vmatprep.mubr.bf16.mxu0 0
    %494 = vmatmul.mubr.bf16.gmra.mxu0 %v450
    %v495 = vpop.f32.mrf.mxu0
    %v496 = vadd.f32 0.0, %v495
    %v497 = vpop.f32.mrf.mxu0
    %v498 = vpop.f32.mrf.mxu0
    %v499 = vadd.f32 0.0, %v498
    %v500 = vpop.f32.mrf.mxu0
    %501 = vmatprep.mubr.bf16.mxu0 0
    %502 = vmatmul.mubr.bf16.gmra.mxu0 %v453
    %v503 = vpop.f32.mrf.mxu0
    %v504 = vadd.f32 0.0, %v503
    %v505 = vpop.f32.mrf.mxu0
    %v506 = vpop.f32.mrf.mxu0
    %v507 = vadd.f32 0.0, %v506
    %v508 = vpop.f32.mrf.mxu0
    %509 = vmatprep.mubr.bf16.mxu0 0
    %510 = vmatmul.mubr.bf16.gmra.mxu0 %v456
    %v511 = vpop.f32.mrf.mxu0
    %v512 = vadd.f32 0.0, %v511
    %v513 = vpop.f32.mrf.mxu0
    %v514 = vpop.f32.mrf.mxu0
    %v515 = vadd.f32 0.0, %v514
    %v516 = vpop.f32.mrf.mxu0
    %517 = vmatprep.mubr.bf16.mxu0 0
    %518 = vmatmul.mubr.bf16.gmra.mxu0 %v459
    %v519 = vpop.f32.mrf.mxu0
    %v520 = vadd.f32 0.0, %v519
    %v521 = vpop.f32.mrf.mxu0
    %v522 = vpop.f32.mrf.mxu0
    %v523 = vadd.f32 0.0, %v522
    %v524 = vpop.f32.mrf.mxu0
    %525 = vdwg.mxu0
    %v526 = vmul.f32 %v496, %v158
    %v527 = vmul.f32 %v499, %v159
    %v528 = vmul.f32 %v504, %v160
    %v529 = vmul.f32 %v507, %v161
    %v530 = vmul.f32 %v512, %v162
    %v531 = vmul.f32 %v515, %v163
    %v532 = vmul.f32 %v520, %v164
    %v533 = vmul.f32 %v523, %v165
    %v534 = vadd.f32 %v526, %v528
    %v535 = vadd.f32 %v527, %v529
    %v536 = vadd.f32 %v534, %v530
    %v537 = vadd.f32 %v535, %v531
    %v538 = vadd.f32 %v536, %v532
    %v539 = vadd.f32 %v537, %v533
    %v540 = vpack.c.bf16 %v539, %v538
    %v541 = vld [vmem:[#allocation11 + $0x1] sm:$0x1]
    %v542 = vlaneseq
    %v543 = vshrl.u32 %v542, 7
    %v544 = vsub.s32 0, %v543
    %v545 = vrot.slane %v541, %v544
    %546 = vrot.lane.b32.xlu0 %v187, 32
    %v547 = vpop.permute.xlu0 %546
    %548 = vrot.lane.b32.xlu0 %v188, 32
    %v549 = vpop.permute.xlu0 %548
    %v553 = vsel %vm191, %v540, 0
    %555 = vmatprep.subr.bf16.mxu0 0
    %556 = vmatpush1.bf16.msra.mxu0 0
    %557 = vmatprep.subr.bf16.mxu0 0
    %558 = vmatpush1.bf16.msra.mxu0 0
    %559 = vmatprep.subr.bf16.mxu0 0
    %560 = vmatpush1.bf16.msra.mxu0 0
    %561 = vmatprep.subr.bf16.mxu0 0
    %562 = vmatpush1.bf16.msra.mxu0 0
    %563 = vmatprep.subr.bf16.mxu0 0
    %564 = vmatpush1.bf16.msra.mxu0 0
    %565 = vmatprep.subr.bf16.mxu0 0
    %566 = vmatpush1.bf16.msra.mxu0 0
    %567 = vmatprep.subr.bf16.mxu0 0
    %568 = vmatpush1.bf16.msra.mxu0 %v549
    %569 = vmatprep.subr.bf16.mxu0 0
    %570 = vmatpush1.bf16.msra.mxu0 %v547
    %571 = vmatprep.subr.bf16.mxu0 0
    %572 = vmatpush2.bf16.msra.mxu0 0
    %573 = vmatprep.subr.bf16.mxu0 0
    %574 = vmatpush2.bf16.msra.mxu0 0
    %575 = vmatprep.subr.bf16.mxu0 0
    %576 = vmatpush2.bf16.msra.mxu0 0
    %577 = vmatprep.subr.bf16.mxu0 0
    %578 = vmatpush2.bf16.msra.mxu0 0
    %579 = vmatprep.subr.bf16.mxu0 0
    %580 = vmatpush2.bf16.msra.mxu0 0
    %581 = vmatprep.subr.bf16.mxu0 0
    %582 = vmatpush2.bf16.msra.mxu0 0
    %583 = vmatprep.subr.bf16.mxu0 0
    %584 = vmatpush2.bf16.msra.mxu0 0
    %585 = vmatprep.subr.bf16.mxu0 0
    %586 = vmatpush2.bf16.msra.mxu0 0
    %587 = vmatprep.mubr.bf16.mxu0 0
    %588 = vmatmul.mubr.bf16.gmra.mxu0 %v553
    %v589 = vpop.f32.mrf.mxu0
    %v590 = vadd.f32 %v545, %v589
    %v591 = vpop.f32.mrf.mxu0
    %v592 = vpop.f32.mrf.mxu0
    %v593 = vadd.f32 %v545, %v592
    %v594 = vpop.f32.mrf.mxu0
    %595 = vdwg.mxu0
    %v596 = vadd.f32 %v146, %v590
    %v597 = vadd.f32 %v147, %v593
    %v598 = vld [vmem:[#allocation11 + $0x7] sm:$0x1]
    %v599 = vld [vmem:[#allocation11 + $0x8] sm:$0x1]
    %v600 = vsel %vm191, %v596, 0.0
    %601 = vadd.xlane.f32.xlu0 %v600
    %v602 = vpop.xlane.xlu0 %601
    %v603 = vsel %vm191, %v597, 0.0
    %604 = vadd.xlane.f32.xlu0 %v603
    %v605 = vpop.xlane.xlu0 %604
    %v606 = vrcp.pop 32.0
    %v607 = vmul.f32 %v602, %v606
    %v608 = vmul.f32 %v605, %v606
    %v609 = vsub.f32 %v596, %v607
    %v610 = vsub.f32 %v597, %v608
    %v611 = vmul.f32 %v609, %v609
    %v612 = vmul.f32 %v610, %v610
    %v613 = vsel %vm191, %v611, 0.0
    %614 = vadd.xlane.f32.xlu0 %v613
    %v615 = vpop.xlane.xlu0 %614
    %v616 = vsel %vm191, %v612, 0.0
    %617 = vadd.xlane.f32.xlu0 %v616
    %v618 = vpop.xlane.xlu0 %617
    %v619 = vmul.f32 %v615, %v606
    %v620 = vmul.f32 %v618, %v606
    %v621 = vadd.f32 %v619, 1e-05
    %v622 = vadd.f32 %v620, 1e-05
    %v623 = vrsqrt.pop %v621
    %v624 = vrsqrt.pop %v622
    %v625 = vmul.f32 %v609, %v623
    %v626 = vmul.f32 %v610, %v624
    %v627 = vlaneseq
    %v628 = vshrl.u32 %v627, 7
    %v629 = vsub.s32 0, %v628
    %v630 = vrot.slane %v598, %v629
    %v631 = vmul.f32 %v625, %v630
    %v632 = vmul.f32 %v626, %v630
    %v633 = vlaneseq
    %v634 = vshrl.u32 %v633, 7
    %v635 = vsub.s32 0, %v634
    %v636 = vrot.slane %v599, %v635
    %v637 = vadd.f32 %v631, %v636
    %v638 = vadd.f32 %v632, %v636
    %v639 = vadd.f32 %v148, %v154
    %v640 = vadd.f32 %v149, %v155
    %v641 = vadd.f32 %v150, %v156
    %v642 = vadd.f32 %v151, %v157
    %v643 = vld [vmem:[#allocation10 + $0x4] sm:$0xf]
    %v644 = vld [vmem:[#allocation10 + $0x10] sm:$0xf]
    %v645 = vld [vmem:[#allocation10 + $0x1c] sm:$0xf]
    %v646 = vld [vmem:[#allocation10 + $0x28] sm:$0xf]
    %v647 = vpack.c.bf16 %v640, %v639
    %v648 = vpack.c.bf16 %v642, %v641
    %v649 = vpack.c.bf16 %v149, %v148
    %v650 = vpack.c.bf16 %v151, %v150
    %v651 = vld [vmem:[#allocation11 + $0x3] sm:$0x1]
    %v652 = vlaneseq
    %v653 = vshrl.u32 %v652, 7
    %v654 = vsub.s32 0, %v653
    %v655 = vrot.slane %v651, %v654
    %v660 = vunpack.c.l.b16 %v643
    %v661 = vunpack.c.l.b16 %v644
    %v662 = vunpack.c.l.b16 %v645
    %v663 = vunpack.c.l.b16 %v646
    %v664 = vpack.c.b16 %v661, %v660
    %v665 = vpack.c.b16 %v663, %v662
    %666 = vrot.lane.b32.xlu0 %v664, 96
    %v667 = vpop.permute.xlu0 %666
    %668 = vrot.lane.b32.xlu0 %v665, 96
    %v669 = vpop.permute.xlu0 %668
    %v673 = vsel %vm191, %v647, 0
    %v676 = vsel %vm191, %v648, 0
    %v679 = vsel %vm191, %v649, 0
    %v682 = vsel %vm191, %v650, 0
    %684 = vmatprep.subr.bf16.mxu0 0
    %685 = vmatpush1.bf16.msra.mxu0 0
    %686 = vmatprep.subr.bf16.mxu0 0
    %687 = vmatpush1.bf16.msra.mxu0 0
    %688 = vmatprep.subr.bf16.mxu0 0
    %689 = vmatpush1.bf16.msra.mxu0 0
    %690 = vmatprep.subr.bf16.mxu0 0
    %691 = vmatpush1.bf16.msra.mxu0 0
    %692 = vmatprep.subr.bf16.mxu0 0
    %693 = vmatpush1.bf16.msra.mxu0 0
    %694 = vmatprep.subr.bf16.mxu0 0
    %695 = vmatpush1.bf16.msra.mxu0 0
    %696 = vmatprep.subr.bf16.mxu0 0
    %697 = vmatpush1.bf16.msra.mxu0 %v669
    %698 = vmatprep.subr.bf16.mxu0 0
    %699 = vmatpush1.bf16.msra.mxu0 %v667
    %700 = vmatprep.subr.bf16.mxu0 0
    %701 = vmatpush2.bf16.msra.mxu0 0
    %702 = vmatprep.subr.bf16.mxu0 0
    %703 = vmatpush2.bf16.msra.mxu0 0
    %704 = vmatprep.subr.bf16.mxu0 0
    %705 = vmatpush2.bf16.msra.mxu0 0
    %706 = vmatprep.subr.bf16.mxu0 0
    %707 = vmatpush2.bf16.msra.mxu0 0
    %708 = vmatprep.subr.bf16.mxu0 0
    %709 = vmatpush2.bf16.msra.mxu0 0
    %710 = vmatprep.subr.bf16.mxu0 0
    %711 = vmatpush2.bf16.msra.mxu0 0
    %712 = vmatprep.subr.bf16.mxu0 0
    %713 = vmatpush2.bf16.msra.mxu0 0
    %714 = vmatprep.subr.bf16.mxu0 0
    %715 = vmatpush2.bf16.msra.mxu0 0
    %716 = vmatprep.mubr.bf16.mxu0 0
    %717 = vmatmul.mubr.bf16.gmra.mxu0 %v673
    %v718 = vpop.f32.mrf.mxu0
    %v719 = vadd.f32 %v655, %v718
    %v720 = vpop.f32.mrf.mxu0
    %v721 = vpop.f32.mrf.mxu0
    %v722 = vadd.f32 %v655, %v721
    %v723 = vpop.f32.mrf.mxu0
    %724 = vmatprep.mubr.bf16.mxu0 0
    %725 = vmatmul.mubr.bf16.gmra.mxu0 %v676
    %v726 = vpop.f32.mrf.mxu0
    %v727 = vadd.f32 %v655, %v726
    %v728 = vpop.f32.mrf.mxu0
    %v729 = vpop.f32.mrf.mxu0
    %v730 = vadd.f32 %v655, %v729
    %v731 = vpop.f32.mrf.mxu0
    %732 = vmatprep.mubr.bf16.mxu0 0
    %733 = vmatmul.mubr.bf16.gmra.mxu0 %v679
    %v734 = vpop.f32.mrf.mxu0
    %v735 = vadd.f32 %v655, %v734
    %v736 = vpop.f32.mrf.mxu0
    %v737 = vpop.f32.mrf.mxu0
    %v738 = vadd.f32 %v655, %v737
    %v739 = vpop.f32.mrf.mxu0
    %740 = vmatprep.mubr.bf16.mxu0 0
    %741 = vmatmul.mubr.bf16.gmra.mxu0 %v682
    %v742 = vpop.f32.mrf.mxu0
    %v743 = vadd.f32 %v655, %v742
    %v744 = vpop.f32.mrf.mxu0
    %v745 = vpop.f32.mrf.mxu0
    %v746 = vadd.f32 %v655, %v745
    %v747 = vpop.f32.mrf.mxu0
    %748 = vdwg.mxu0
    %v749 = vadd.f32 %v637, %v152
    %v750 = vadd.f32 %v638, %v153
    %v751 = vpack.c.bf16 %v750, %v749
    %v752 = vld [vmem:[#allocation11 + $0x2] sm:$0x1]
    %v753 = vlaneseq
    %v754 = vshrl.u32 %v753, 7
    %v755 = vsub.s32 0, %v754
    %v756 = vrot.slane %v752, %v755
    %v760 = vsel %vm191, %v751, 0
    %762 = vmatprep.subr.bf16.mxu0 0
    %763 = vmatpush1.bf16.msra.mxu0 0
    %764 = vmatprep.subr.bf16.mxu0 0
    %765 = vmatpush1.bf16.msra.mxu0 0
    %766 = vmatprep.subr.bf16.mxu0 0
    %767 = vmatpush1.bf16.msra.mxu0 0
    %768 = vmatprep.subr.bf16.mxu0 0
    %769 = vmatpush1.bf16.msra.mxu0 0
    %770 = vmatprep.subr.bf16.mxu0 0
    %771 = vmatpush1.bf16.msra.mxu0 0
    %772 = vmatprep.subr.bf16.mxu0 0
    %773 = vmatpush1.bf16.msra.mxu0 0
    %774 = vmatprep.subr.bf16.mxu0 0
    %775 = vmatpush1.bf16.msra.mxu0 %v665
    %776 = vmatprep.subr.bf16.mxu0 0
    %777 = vmatpush1.bf16.msra.mxu0 %v664
    %778 = vmatprep.subr.bf16.mxu0 0
    %779 = vmatpush2.bf16.msra.mxu0 0
    %780 = vmatprep.subr.bf16.mxu0 0
    %781 = vmatpush2.bf16.msra.mxu0 0
    %782 = vmatprep.subr.bf16.mxu0 0
    %783 = vmatpush2.bf16.msra.mxu0 0
    %784 = vmatprep.subr.bf16.mxu0 0
    %785 = vmatpush2.bf16.msra.mxu0 0
    %786 = vmatprep.subr.bf16.mxu0 0
    %787 = vmatpush2.bf16.msra.mxu0 0
    %788 = vmatprep.subr.bf16.mxu0 0
    %789 = vmatpush2.bf16.msra.mxu0 0
    %790 = vmatprep.subr.bf16.mxu0 0
    %791 = vmatpush2.bf16.msra.mxu0 0
    %792 = vmatprep.subr.bf16.mxu0 0
    %793 = vmatpush2.bf16.msra.mxu0 0
    %794 = vmatprep.mubr.bf16.mxu0 0
    %795 = vmatmul.mubr.bf16.gmra.mxu0 %v760
    %v796 = vpop.f32.mrf.mxu0
    %v797 = vadd.f32 %v756, %v796
    %v798 = vpop.f32.mrf.mxu0
    %v799 = vpop.f32.mrf.mxu0
    %v800 = vadd.f32 %v756, %v799
    %v801 = vpop.f32.mrf.mxu0
    %802 = vdwg.mxu0
    %v803 = vld [vmem:[%s9] sm:$0xff]
    %v804 = vld [vmem:[%s9 + $0x8] sm:$0xff]
    %v805 = vld [vmem:[%s9 + $0x10] sm:$0xff]
    %v806 = vld [vmem:[%s9 + $0x18] sm:$0xff]
    %v807 = vld [vmem:[%s9 + $0x20] sm:$0xff]
    %v808 = vld [vmem:[%s9 + $0x28] sm:$0xff]
    %v809 = vld [vmem:[%s9 + $0x30] sm:$0xff]
    %v810 = vld [vmem:[%s9 + $0x38] sm:$0xff]
    %v811 = vmul.f32 %v797, %v158
    %v812 = vmul.f32 %v800, %v159
    %v813 = vmul.f32 %v797, %v160
    %v814 = vmul.f32 %v800, %v161
    %v815 = vmul.f32 %v797, %v162
    %v816 = vmul.f32 %v800, %v163
    %v817 = vmul.f32 %v797, %v164
    %v818 = vmul.f32 %v800, %v165
    %v819 = vpack.c.bf16 %v812, %v811
    %v820 = vpack.c.bf16 %v814, %v813
    %v821 = vpack.c.bf16 %v816, %v815
    %v822 = vpack.c.bf16 %v818, %v817
    %v823 = vpack.c.bf16 %v722, %v719
    %v824 = vpack.c.bf16 %v730, %v727
    %v826 = vsel %vm191, %v819, 0
    %v829 = vsel %vm191, %v820, 0
    %v832 = vsel %vm191, %v821, 0
    %v835 = vsel %vm191, %v822, 0
    %v838 = vsel %vm191, %v823, 0
    %v841 = vsel %vm191, %v824, 0
    %843 = vmatprep.subr.bf16.mxu0 0
    %844 = vmatpush1.bf16.xpose.msra.mxu0 0
    %845 = vmatprep.subr.bf16.mxu0 0
    %846 = vmatpush1.bf16.xpose.msra.mxu0 0
    %847 = vmatprep.subr.bf16.mxu0 0
    %848 = vmatpush1.bf16.xpose.msra.mxu0 0
    %849 = vmatprep.subr.bf16.mxu0 0
    %850 = vmatpush1.bf16.xpose.msra.mxu0 0
    %851 = vmatprep.subr.bf16.mxu0 0
    %852 = vmatpush1.bf16.xpose.msra.mxu0 0
    %853 = vmatprep.subr.bf16.mxu0 0
    %854 = vmatpush1.bf16.xpose.msra.mxu0 0
    %855 = vmatprep.subr.bf16.mxu0 0
    %856 = vmatpush1.bf16.xpose.msra.mxu0 %v841
    %857 = vmatprep.subr.bf16.mxu0 0
    %858 = vmatpush1.bf16.xpose.msra.mxu0 %v838
    %859 = vmatprep.subr.bf16.mxu0 0
    %860 = vmatpush2.bf16.xpose.msra.mxu0 0
    %861 = vmatprep.subr.bf16.mxu0 0
    %862 = vmatpush2.bf16.xpose.msra.mxu0 0
    %863 = vmatprep.subr.bf16.mxu0 0
    %864 = vmatpush2.bf16.xpose.msra.mxu0 0
    %865 = vmatprep.subr.bf16.mxu0 0
    %866 = vmatpush2.bf16.xpose.msra.mxu0 0
    %867 = vmatprep.subr.bf16.mxu0 0
    %868 = vmatpush2.bf16.xpose.msra.mxu0 0
    %869 = vmatprep.subr.bf16.mxu0 0
    %870 = vmatpush2.bf16.xpose.msra.mxu0 0
    %871 = vmatprep.subr.bf16.mxu0 0
    %872 = vmatpush2.bf16.xpose.msra.mxu0 0
    %873 = vmatprep.subr.bf16.mxu0 0
    %874 = vmatpush2.bf16.xpose.msra.mxu0 0
    %875 = vmatprep.mubr.bf16.mxu0 0
    %876 = vmatmul.mubr.bf16.gmra.mxu0 %v826
    %v877 = vpop.f32.mrf.mxu0
    %v878 = vadd.f32 %v803, %v877
    %v879 = vpop.f32.mrf.mxu0
    %v880 = vpop.f32.mrf.mxu0
    %v881 = vadd.f32 %v804, %v880
    %v882 = vpop.f32.mrf.mxu0
    %883 = vmatprep.mubr.bf16.mxu0 0
    %884 = vmatmul.mubr.bf16.gmra.mxu0 %v829
    %v885 = vpop.f32.mrf.mxu0
    %v886 = vadd.f32 %v805, %v885
    %v887 = vpop.f32.mrf.mxu0
    %v888 = vpop.f32.mrf.mxu0
    %v889 = vadd.f32 %v806, %v888
    %v890 = vpop.f32.mrf.mxu0
    %891 = vmatprep.mubr.bf16.mxu0 0
    %892 = vmatmul.mubr.bf16.gmra.mxu0 %v832
    %v893 = vpop.f32.mrf.mxu0
    %v894 = vadd.f32 %v807, %v893
    %v895 = vpop.f32.mrf.mxu0
    %v896 = vpop.f32.mrf.mxu0
    %v897 = vadd.f32 %v808, %v896
    %v898 = vpop.f32.mrf.mxu0
    %899 = vmatprep.mubr.bf16.mxu0 0
    %900 = vmatmul.mubr.bf16.gmra.mxu0 %v835
    %v901 = vpop.f32.mrf.mxu0
    %v902 = vadd.f32 %v809, %v901
    %v903 = vpop.f32.mrf.mxu0
    %v904 = vpop.f32.mrf.mxu0
    %v905 = vadd.f32 %v810, %v904
    %v906 = vpop.f32.mrf.mxu0
    %907 = vdwg.mxu0
    %v908 = vsel %vm191, %v878, -inf
    %909 = vmax.xlane.f32.xlu0 %v908
    %v910 = vpop.xlane.xlu0 %909
    %v911 = vsel %vm191, %v881, -inf
    %912 = vmax.xlane.f32.xlu0 %v911
    %v913 = vpop.xlane.xlu0 %912
    %v914 = vsel %vm191, %v886, -inf
    %915 = vmax.xlane.f32.xlu0 %v914
    %v916 = vpop.xlane.xlu0 %915
    %v917 = vsel %vm191, %v889, -inf
    %918 = vmax.xlane.f32.xlu0 %v917
    %v919 = vpop.xlane.xlu0 %918
    %v920 = vsel %vm191, %v894, -inf
    %921 = vmax.xlane.f32.xlu0 %v920
    %v922 = vpop.xlane.xlu0 %921
    %v923 = vsel %vm191, %v897, -inf
    %924 = vmax.xlane.f32.xlu0 %v923
    %v925 = vpop.xlane.xlu0 %924
    %v926 = vsel %vm191, %v902, -inf
    %927 = vmax.xlane.f32.xlu0 %v926
    %v928 = vpop.xlane.xlu0 %927
    %v929 = vsel %vm191, %v905, -inf
    %930 = vmax.xlane.f32.xlu0 %v929
    %v931 = vpop.xlane.xlu0 %930
    %v932 = vsub.f32 %v878, %v910
    %v933 = vsub.f32 %v881, %v913
    %v934 = vsub.f32 %v886, %v916
    %v935 = vsub.f32 %v889, %v919
    %v936 = vsub.f32 %v894, %v922
    %v937 = vsub.f32 %v897, %v925
    %v938 = vsub.f32 %v902, %v928
    %v939 = vsub.f32 %v905, %v931
    %v940 = vmul.f32 %v932, 1.442695
    %v941 = vpow.pop %v940
    %v942 = vmul.f32 %v933, 1.442695
    %v943 = vpow.pop %v942
    %v944 = vmul.f32 %v934, 1.442695
    %v945 = vpow.pop %v944
    %v946 = vmul.f32 %v935, 1.442695
    %v947 = vpow.pop %v946
    %v948 = vmul.f32 %v936, 1.442695
    %v949 = vpow.pop %v948
    %v950 = vmul.f32 %v937, 1.442695
    %v951 = vpow.pop %v950
    %v952 = vmul.f32 %v938, 1.442695
    %v953 = vpow.pop %v952
    %v954 = vmul.f32 %v939, 1.442695
    %v955 = vpow.pop %v954
    %v956 = vsel %vm191, %v941, 0.0
    %957 = vadd.xlane.f32.xlu0 %v956
    %v958 = vpop.xlane.xlu0 %957
    %v959 = vsel %vm191, %v943, 0.0
    %960 = vadd.xlane.f32.xlu0 %v959
    %v961 = vpop.xlane.xlu0 %960
    %v962 = vsel %vm191, %v945, 0.0
    %963 = vadd.xlane.f32.xlu0 %v962
    %v964 = vpop.xlane.xlu0 %963
    %v965 = vsel %vm191, %v947, 0.0
    %966 = vadd.xlane.f32.xlu0 %v965
    %v967 = vpop.xlane.xlu0 %966
    %v968 = vsel %vm191, %v949, 0.0
    %969 = vadd.xlane.f32.xlu0 %v968
    %v970 = vpop.xlane.xlu0 %969
    %v971 = vsel %vm191, %v951, 0.0
    %972 = vadd.xlane.f32.xlu0 %v971
    %v973 = vpop.xlane.xlu0 %972
    %v974 = vsel %vm191, %v953, 0.0
    %975 = vadd.xlane.f32.xlu0 %v974
    %v976 = vpop.xlane.xlu0 %975
    %v977 = vsel %vm191, %v955, 0.0
    %978 = vadd.xlane.f32.xlu0 %v977
    %v979 = vpop.xlane.xlu0 %978
    %v980 = vrcp.pop %v958
    %v981 = vrcp.pop %v961
    %v982 = vrcp.pop %v964
    %v983 = vrcp.pop %v967
    %v984 = vrcp.pop %v970
    %v985 = vrcp.pop %v973
    %v986 = vrcp.pop %v976
    %v987 = vrcp.pop %v979
    %v988 = vmul.f32 %v941, %v980
    %v989 = vmul.f32 %v943, %v981
    %v990 = vmul.f32 %v945, %v982
    %v991 = vmul.f32 %v947, %v983
    %v992 = vmul.f32 %v949, %v984
    %v993 = vmul.f32 %v951, %v985
    %v994 = vmul.f32 %v953, %v986
    %v995 = vmul.f32 %v955, %v987
    %v996 = vpack.c.bf16 %v989, %v988
    %v997 = vpack.c.bf16 %v991, %v990
    %v998 = vpack.c.bf16 %v993, %v992
    %v999 = vpack.c.bf16 %v995, %v994
    %v1000 = vpack.c.bf16 %v738, %v735
    %v1001 = vpack.c.bf16 %v746, %v743
    %1004 = vrot.lane.b32.xlu0 %v1000, 96
    %v1005 = vpop.permute.xlu0 %1004
    %1006 = vrot.lane.b32.xlu0 %v1001, 96
    %v1007 = vpop.permute.xlu0 %1006
    %v1011 = vsel %vm191, %v996, 0
    %v1014 = vsel %vm191, %v997, 0
    %v1017 = vsel %vm191, %v998, 0
    %v1020 = vsel %vm191, %v999, 0
    %1022 = vmatprep.subr.bf16.mxu0 0
    %1023 = vmatpush1.bf16.msra.mxu0 0
    %1024 = vmatprep.subr.bf16.mxu0 0
    %1025 = vmatpush1.bf16.msra.mxu0 0
    %1026 = vmatprep.subr.bf16.mxu0 0
    %1027 = vmatpush1.bf16.msra.mxu0 0
    %1028 = vmatprep.subr.bf16.mxu0 0
    %1029 = vmatpush1.bf16.msra.mxu0 0
    %1030 = vmatprep.subr.bf16.mxu0 0
    %1031 = vmatpush1.bf16.msra.mxu0 0
    %1032 = vmatprep.subr.bf16.mxu0 0
    %1033 = vmatpush1.bf16.msra.mxu0 0
    %1034 = vmatprep.subr.bf16.mxu0 0
    %1035 = vmatpush1.bf16.msra.mxu0 %v1007
    %1036 = vmatprep.subr.bf16.mxu0 0
    %1037 = vmatpush1.bf16.msra.mxu0 %v1005
    %1038 = vmatprep.subr.bf16.mxu0 0
    %1039 = vmatpush2.bf16.msra.mxu0 0
    %1040 = vmatprep.subr.bf16.mxu0 0
    %1041 = vmatpush2.bf16.msra.mxu0 0
    %1042 = vmatprep.subr.bf16.mxu0 0
    %1043 = vmatpush2.bf16.msra.mxu0 0
    %1044 = vmatprep.subr.bf16.mxu0 0
    %1045 = vmatpush2.bf16.msra.mxu0 0
    %1046 = vmatprep.subr.bf16.mxu0 0
    %1047 = vmatpush2.bf16.msra.mxu0 0
    %1048 = vmatprep.subr.bf16.mxu0 0
    %1049 = vmatpush2.bf16.msra.mxu0 0
    %1050 = vmatprep.subr.bf16.mxu0 0
    %1051 = vmatpush2.bf16.msra.mxu0 0
    %1052 = vmatprep.subr.bf16.mxu0 0
    %1053 = vmatpush2.bf16.msra.mxu0 0
    %1054 = vmatprep.mubr.bf16.mxu0 0
    %1055 = vmatmul.mubr.bf16.gmra.mxu0 %v1011
    %v1056 = vpop.f32.mrf.mxu0
    %v1057 = vadd.f32 0.0, %v1056
    %v1058 = vpop.f32.mrf.mxu0
    %v1059 = vpop.f32.mrf.mxu0
    %v1060 = vadd.f32 0.0, %v1059
    %v1061 = vpop.f32.mrf.mxu0
    %1062 = vmatprep.mubr.bf16.mxu0 0
    %1063 = vmatmul.mubr.bf16.gmra.mxu0 %v1014
    %v1064 = vpop.f32.mrf.mxu0
    %v1065 = vadd.f32 0.0, %v1064
    %v1066 = vpop.f32.mrf.mxu0
    %v1067 = vpop.f32.mrf.mxu0
    %v1068 = vadd.f32 0.0, %v1067
    %v1069 = vpop.f32.mrf.mxu0
    %1070 = vmatprep.mubr.bf16.mxu0 0
    %1071 = vmatmul.mubr.bf16.gmra.mxu0 %v1017
    %v1072 = vpop.f32.mrf.mxu0
    %v1073 = vadd.f32 0.0, %v1072
    %v1074 = vpop.f32.mrf.mxu0
    %v1075 = vpop.f32.mrf.mxu0
    %v1076 = vadd.f32 0.0, %v1075
    %v1077 = vpop.f32.mrf.mxu0
    %1078 = vmatprep.mubr.bf16.mxu0 0
    %1079 = vmatmul.mubr.bf16.gmra.mxu0 %v1020
    %v1080 = vpop.f32.mrf.mxu0
    %v1081 = vadd.f32 0.0, %v1080
    %v1082 = vpop.f32.mrf.mxu0
    %v1083 = vpop.f32.mrf.mxu0
    %v1084 = vadd.f32 0.0, %v1083
    %v1085 = vpop.f32.mrf.mxu0
    %1086 = vdwg.mxu0
    %v1087 = vmul.f32 %v1057, %v158
    %v1088 = vmul.f32 %v1060, %v159
    %v1089 = vmul.f32 %v1065, %v160
    %v1090 = vmul.f32 %v1068, %v161
    %v1091 = vmul.f32 %v1073, %v162
    %v1092 = vmul.f32 %v1076, %v163
    %v1093 = vmul.f32 %v1081, %v164
    %v1094 = vmul.f32 %v1084, %v165
    %v1095 = vadd.f32 %v1087, %v1089
    %v1096 = vadd.f32 %v1088, %v1090
    %v1097 = vadd.f32 %v1095, %v1091
    %v1098 = vadd.f32 %v1096, %v1092
    %v1099 = vadd.f32 %v1097, %v1093
    %v1100 = vadd.f32 %v1098, %v1094
    %v1101 = vpack.c.bf16 %v1100, %v1099
    %v1102 = vld [vmem:[#allocation11 + $0x4] sm:$0x1]
    %v1103 = vlaneseq
    %v1104 = vshrl.u32 %v1103, 7
    %v1105 = vsub.s32 0, %v1104
    %v1106 = vrot.slane %v1102, %v1105
    %1107 = vrot.lane.b32.xlu0 %v664, 32
    %v1108 = vpop.permute.xlu0 %1107
    %1109 = vrot.lane.b32.xlu0 %v665, 32
    %v1110 = vpop.permute.xlu0 %1109
    %v1114 = vsel %vm191, %v1101, 0
    %1116 = vmatprep.subr.bf16.mxu0 0
    %1117 = vmatpush1.bf16.msra.mxu0 0
    %1118 = vmatprep.subr.bf16.mxu0 0
    %1119 = vmatpush1.bf16.msra.mxu0 0
    %1120 = vmatprep.subr.bf16.mxu0 0
    %1121 = vmatpush1.bf16.msra.mxu0 0
    %1122 = vmatprep.subr.bf16.mxu0 0
    %1123 = vmatpush1.bf16.msra.mxu0 0
    %1124 = vmatprep.subr.bf16.mxu0 0
    %1125 = vmatpush1.bf16.msra.mxu0 0
    %1126 = vmatprep.subr.bf16.mxu0 0
    %1127 = vmatpush1.bf16.msra.mxu0 0
    %1128 = vmatprep.subr.bf16.mxu0 0
    %1129 = vmatpush1.bf16.msra.mxu0 %v1110
    %1130 = vmatprep.subr.bf16.mxu0 0
    %1131 = vmatpush1.bf16.msra.mxu0 %v1108
    %1132 = vmatprep.subr.bf16.mxu0 0
    %1133 = vmatpush2.bf16.msra.mxu0 0
    %1134 = vmatprep.subr.bf16.mxu0 0
    %1135 = vmatpush2.bf16.msra.mxu0 0
    %1136 = vmatprep.subr.bf16.mxu0 0
    %1137 = vmatpush2.bf16.msra.mxu0 0
    %1138 = vmatprep.subr.bf16.mxu0 0
    %1139 = vmatpush2.bf16.msra.mxu0 0
    %1140 = vmatprep.subr.bf16.mxu0 0
    %1141 = vmatpush2.bf16.msra.mxu0 0
    %1142 = vmatprep.subr.bf16.mxu0 0
    %1143 = vmatpush2.bf16.msra.mxu0 0
    %1144 = vmatprep.subr.bf16.mxu0 0
    %1145 = vmatpush2.bf16.msra.mxu0 0
    %1146 = vmatprep.subr.bf16.mxu0 0
    %1147 = vmatpush2.bf16.msra.mxu0 0
    %1148 = vmatprep.mubr.bf16.mxu0 0
    %1149 = vmatmul.mubr.bf16.gmra.mxu0 %v1114
    %v1150 = vpop.f32.mrf.mxu0
    %v1151 = vadd.f32 %v1106, %v1150
    %v1152 = vpop.f32.mrf.mxu0
    %v1153 = vpop.f32.mrf.mxu0
    %v1154 = vadd.f32 %v1106, %v1153
    %v1155 = vpop.f32.mrf.mxu0
    %1156 = vdwg.mxu0
    %v1157 = vadd.f32 %v637, %v1151
    %v1158 = vadd.f32 %v638, %v1154
    %v1159 = vld [vmem:[#allocation11 + $0x9] sm:$0x1]
    %v1160 = vld [vmem:[#allocation11 + $0xa] sm:$0x1]
    %v1161 = vsel %vm191, %v1157, 0.0
    %1162 = vadd.xlane.f32.xlu0 %v1161
    %v1163 = vpop.xlane.xlu0 %1162
    %v1164 = vsel %vm191, %v1158, 0.0
    %1165 = vadd.xlane.f32.xlu0 %v1164
    %v1166 = vpop.xlane.xlu0 %1165
    %v1167 = vmul.f32 %v1163, %v606
    %v1168 = vmul.f32 %v1166, %v606
    %v1169 = vsub.f32 %v1157, %v1167
    %v1170 = vsub.f32 %v1158, %v1168
    %v1171 = vmul.f32 %v1169, %v1169
    %v1172 = vmul.f32 %v1170, %v1170
    %v1173 = vsel %vm191, %v1171, 0.0
    %1174 = vadd.xlane.f32.xlu0 %v1173
    %v1175 = vpop.xlane.xlu0 %1174
    %v1176 = vsel %vm191, %v1172, 0.0
    %1177 = vadd.xlane.f32.xlu0 %v1176
    %v1178 = vpop.xlane.xlu0 %1177
    %v1179 = vmul.f32 %v1175, %v606
    %v1180 = vmul.f32 %v1178, %v606
    %v1181 = vadd.f32 %v1179, 1e-05
    %v1182 = vadd.f32 %v1180, 1e-05
    %v1183 = vrsqrt.pop %v1181
    %v1184 = vrsqrt.pop %v1182
    %v1185 = vmul.f32 %v1169, %v1183
    %v1186 = vmul.f32 %v1170, %v1184
    %v1187 = vlaneseq
    %v1188 = vshrl.u32 %v1187, 7
    %v1189 = vsub.s32 0, %v1188
    %v1190 = vrot.slane %v1159, %v1189
    %v1191 = vmul.f32 %v1185, %v1190
    %v1192 = vmul.f32 %v1186, %v1190
    %v1193 = vlaneseq
    %v1194 = vshrl.u32 %v1193, 7
    %v1195 = vsub.s32 0, %v1194
    %v1196 = vrot.slane %v1160, %v1195
    %v1197 = vadd.f32 %v1191, %v1196
    %v1198 = vadd.f32 %v1192, %v1196
    %v1199 = vld [vmem:[#allocation10 + $0x8] sm:$0xf]
    %v1200 = vld [vmem:[#allocation10 + $0x14] sm:$0xf]
    %v1201 = vld [vmem:[#allocation10 + $0x20] sm:$0xf]
    %v1202 = vld [vmem:[#allocation10 + $0x2c] sm:$0xf]
    %v1203 = vpack.c.bf16 %v1198, %v1197
    %v1204 = vld [vmem:[#allocation11 + $0x5] sm:$0x1]
    %v1205 = vlaneseq
    %v1206 = vshrl.u32 %v1205, 7
    %v1207 = vsub.s32 0, %v1206
    %v1208 = vrot.slane %v1204, %v1207
    %v1213 = vunpack.c.l.b16 %v1199
    %v1214 = vunpack.c.l.b16 %v1200
    %v1215 = vunpack.c.l.b16 %v1201
    %v1216 = vunpack.c.l.b16 %v1202
    %v1217 = vpack.c.b16 %v1214, %v1213
    %v1218 = vpack.c.b16 %v1216, %v1215
    %v1222 = vsel %vm191, %v1203, 0
    %1224 = vmatprep.subr.bf16.mxu0 0
    %1225 = vmatpush1.bf16.msra.mxu0 0
    %1226 = vmatprep.subr.bf16.mxu0 0
    %1227 = vmatpush1.bf16.msra.mxu0 0
    %1228 = vmatprep.subr.bf16.mxu0 0
    %1229 = vmatpush1.bf16.msra.mxu0 0
    %1230 = vmatprep.subr.bf16.mxu0 0
    %1231 = vmatpush1.bf16.msra.mxu0 0
    %1232 = vmatprep.subr.bf16.mxu0 0
    %1233 = vmatpush1.bf16.msra.mxu0 0
    %1234 = vmatprep.subr.bf16.mxu0 0
    %1235 = vmatpush1.bf16.msra.mxu0 0
    %1236 = vmatprep.subr.bf16.mxu0 0
    %1237 = vmatpush1.bf16.msra.mxu0 %v1218
    %1238 = vmatprep.subr.bf16.mxu0 0
    %1239 = vmatpush1.bf16.msra.mxu0 %v1217
    %1240 = vmatprep.subr.bf16.mxu0 0
    %1241 = vmatpush2.bf16.msra.mxu0 0
    %1242 = vmatprep.subr.bf16.mxu0 0
    %1243 = vmatpush2.bf16.msra.mxu0 0
    %1244 = vmatprep.subr.bf16.mxu0 0
    %1245 = vmatpush2.bf16.msra.mxu0 0
    %1246 = vmatprep.subr.bf16.mxu0 0
    %1247 = vmatpush2.bf16.msra.mxu0 0
    %1248 = vmatprep.subr.bf16.mxu0 0
    %1249 = vmatpush2.bf16.msra.mxu0 0
    %1250 = vmatprep.subr.bf16.mxu0 0
    %1251 = vmatpush2.bf16.msra.mxu0 0
    %1252 = vmatprep.subr.bf16.mxu0 0
    %1253 = vmatpush2.bf16.msra.mxu0 0
    %1254 = vmatprep.subr.bf16.mxu0 0
    %1255 = vmatpush2.bf16.msra.mxu0 0
    %1256 = vmatprep.mubr.bf16.mxu0 0
    %1257 = vmatmul.mubr.bf16.gmra.mxu0 %v1222
    %v1258 = vpop.f32.mrf.mxu0
    %v1259 = vadd.f32 %v1208, %v1258
    %v1260 = vpop.f32.mrf.mxu0
    %v1261 = vpop.f32.mrf.mxu0
    %v1262 = vadd.f32 %v1208, %v1261
    %v1263 = vpop.f32.mrf.mxu0
    %1264 = vdwg.mxu0
    %v1265 = vmax.f32 %v1259, 0.0
    %v1266 = vmax.f32 %v1262, 0.0
    %v1267 = vld [vmem:[%s5] sm:$0xf]
    %v1268 = vld [vmem:[%s5 + $0x4] sm:$0xf]
    %v1269 = vld [vmem:[%s5 + $0x8] sm:$0xf]
    %v1270 = vld [vmem:[%s5 + $0xc] sm:$0xf]
    %v1271 = vld [vmem:[%s5 + $0x10] sm:$0xf]
    %v1272 = vld [vmem:[%s5 + $0x14] sm:$0xf]
    %v1273 = vld [vmem:[%s5 + $0x18] sm:$0xf]
    %v1274 = vld [vmem:[%s5 + $0x1c] sm:$0xf]
    %v1275 = vpack.c.bf16 %v1266, %v1265
    %v1276 = vld [vmem:[#allocation11 + $0x6] sm:$0x1]
    %v1277 = vlaneseq
    %v1278 = vshrl.u32 %v1277, 7
    %v1279 = vsub.s32 0, %v1278
    %v1280 = vrot.slane %v1276, %v1279
    %v1289 = vunpack.c.l.b16 %v1267
    %v1290 = vunpack.c.l.b16 %v1268
    %v1291 = vunpack.c.l.b16 %v1269
    %v1292 = vunpack.c.l.b16 %v1270
    %v1293 = vunpack.c.l.b16 %v1271
    %v1294 = vunpack.c.l.b16 %v1272
    %v1295 = vunpack.c.l.b16 %v1273
    %v1296 = vunpack.c.l.b16 %v1274
    %v1297 = vpack.c.b16 %v1290, %v1289
    %v1298 = vpack.c.b16 %v1292, %v1291
    %v1299 = vpack.c.b16 %v1294, %v1293
    %v1300 = vpack.c.b16 %v1296, %v1295
    %vm1305 = vcmask 523264
    %v1307 = vsel %vm1305, %v1275, 0
    %1309 = vmatprep.subr.bf16.mxu0 0
    %1310 = vmatpush1.bf16.msra.mxu0 0
    %1311 = vmatprep.subr.bf16.mxu0 0
    %1312 = vmatpush1.bf16.msra.mxu0 0
    %1313 = vmatprep.subr.bf16.mxu0 0
    %1314 = vmatpush1.bf16.msra.mxu0 0
    %1315 = vmatprep.subr.bf16.mxu0 0
    %1316 = vmatpush1.bf16.msra.mxu0 0
    %1317 = vmatprep.subr.bf16.mxu0 0
    %1318 = vmatpush1.bf16.msra.mxu0 %v1300
    %1319 = vmatprep.subr.bf16.mxu0 0
    %1320 = vmatpush1.bf16.msra.mxu0 %v1299
    %1321 = vmatprep.subr.bf16.mxu0 0
    %1322 = vmatpush1.bf16.msra.mxu0 %v1298
    %1323 = vmatprep.subr.bf16.mxu0 0
    %1324 = vmatpush1.bf16.msra.mxu0 %v1297
    %1325 = vmatprep.subr.bf16.mxu0 0
    %1326 = vmatpush2.bf16.msra.mxu0 0
    %1327 = vmatprep.subr.bf16.mxu0 0
    %1328 = vmatpush2.bf16.msra.mxu0 0
    %1329 = vmatprep.subr.bf16.mxu0 0
    %1330 = vmatpush2.bf16.msra.mxu0 0
    %1331 = vmatprep.subr.bf16.mxu0 0
    %1332 = vmatpush2.bf16.msra.mxu0 0
    %1333 = vmatprep.subr.bf16.mxu0 0
    %1334 = vmatpush2.bf16.msra.mxu0 0
    %1335 = vmatprep.subr.bf16.mxu0 0
    %1336 = vmatpush2.bf16.msra.mxu0 0
    %1337 = vmatprep.subr.bf16.mxu0 0
    %1338 = vmatpush2.bf16.msra.mxu0 0
    %1339 = vmatprep.subr.bf16.mxu0 0
    %1340 = vmatpush2.bf16.msra.mxu0 0
    %1341 = vmatprep.mubr.bf16.mxu0 0
    %1342 = vmatmul.mubr.bf16.gmra.mxu0 %v1307
    %v1343 = vpop.f32.mrf.mxu0
    %v1344 = vadd.f32 %v1280, %v1343
    %v1345 = vpop.f32.mrf.mxu0
    %v1346 = vpop.f32.mrf.mxu0
    %v1347 = vadd.f32 %v1280, %v1346
    %v1348 = vpop.f32.mrf.mxu0
    %1349 = vdwg.mxu0
    %v1350 = vadd.f32 %v1197, %v1344
    %v1351 = vadd.f32 %v1198, %v1347
    %v1352 = vld [vmem:[#allocation11 + $0xb] sm:$0x1]
    %v1353 = vld [vmem:[#allocation11 + $0xc] sm:$0x1]
    %v1354 = vsel %vm191, %v1350, 0.0
    %1355 = vadd.xlane.f32.xlu0 %v1354
    %v1356 = vpop.xlane.xlu0 %1355
    %v1357 = vsel %vm191, %v1351, 0.0
    %1358 = vadd.xlane.f32.xlu0 %v1357
    %v1359 = vpop.xlane.xlu0 %1358
    %v1360 = vmul.f32 %v1356, %v606
    %v1361 = vmul.f32 %v1359, %v606
    %v1362 = vsub.f32 %v1350, %v1360
    %v1363 = vsub.f32 %v1351, %v1361
    %v1364 = vmul.f32 %v1362, %v1362
    %v1365 = vmul.f32 %v1363, %v1363
    %v1366 = vsel %vm191, %v1364, 0.0
    %1367 = vadd.xlane.f32.xlu0 %v1366
    %v1368 = vpop.xlane.xlu0 %1367
    %v1369 = vsel %vm191, %v1365, 0.0
    %1370 = vadd.xlane.f32.xlu0 %v1369
    %v1371 = vpop.xlane.xlu0 %1370
    %v1372 = vmul.f32 %v1368, %v606
    %v1373 = vmul.f32 %v1371, %v606
    %v1374 = vadd.f32 %v1372, 1e-05
    %v1375 = vadd.f32 %v1373, 1e-05
    %v1376 = vrsqrt.pop %v1374
    %v1377 = vrsqrt.pop %v1375
    %v1378 = vmul.f32 %v1362, %v1376
    %v1379 = vmul.f32 %v1363, %v1377
    %v1380 = vlaneseq
    %v1381 = vshrl.u32 %v1380, 7
    %v1382 = vsub.s32 0, %v1381
    %v1383 = vrot.slane %v1352, %v1382
    %v1384 = vmul.f32 %v1378, %v1383
    %v1385 = vmul.f32 %v1379, %v1383
    %v1386 = vlaneseq
    %v1387 = vshrl.u32 %v1386, 7
    %v1388 = vsub.s32 0, %v1387
    %v1389 = vrot.slane %v1353, %v1388
    %v1390 = vadd.f32 %v1384, %v1389
    %v1391 = vadd.f32 %v1385, %v1389
    %1392 = vst.msk [vmem:[#allocation16] sm:$0xff] %vm191, %v1390
    %1393 = vst.msk [vmem:[#allocation16 + $0x8] sm:$0xff] %vm191, %v1391
    // Predicated region
    $region74: #{transformer_decoder_layer.1} parent=1 // pred_check
      _
    $region75: #{transformer_decoder_layer.1} parent=1 // pred_check_branch
      %1395 = sbr.rel (0) target = $region77
    $region76: #{transformer_decoder_layer.1} parent=1 // pred_region
      %s1397 = ssub.s32 256, 256
      %1398 = vsyncadd [#allocation4], %s1397
      %s1399 = sshll.u32 [#allocation16], 4
      %s1400 = int_to_ptr.vmem [resolvable:$true] %s1399
      %1405 = dma.vmem_to_hbm [thread:$0]  %s1400, 256, %s10, [#allocation4], 128, 128, 8
    $region77: #{transformer_decoder_layer.1} parent=1 // pred_fallthru
      _
    // Predicated region
    $region78: #{transformer_decoder_layer.1} parent=1 // pred_check
      _
    $region79: #{transformer_decoder_layer.1} parent=1 // pred_check_branch
      %1407 = sbr.rel (0) target = $region81
    $region80: #{transformer_decoder_layer.1} parent=1 // pred_region
      %1408 = dma.done [#allocation4], 256
    $region81: #{transformer_decoder_layer.1} parent=1 // pred_fallthru
      _
    %1409 = vsyncpa [#allocation3], 1
    %1410 = vsyncpa [#allocation6], 1
    %1411 = vsyncpa [#allocation9], 1
    %1412 = vsyncpa [#allocation12], 1
    %1413 = vsyncpa [#allocation15], 1
    %1414 = vsyncpa [#allocation4], 1

</llo_original>
